<compile_context>
chip_gen: v7x
topology: tpu7x:2x2x1
jax: 0.10.0
libtpu: 0.0.40
codegen_flags: <defaults>
</compile_context>

<pallas_src>
import functools

import jax
import jax.numpy as jnp
from jax.experimental import pallas as pl
from jax.experimental.pallas import tpu as pltpu

_LANES = 128
_MAX_BLOCK_BYTES = 8 * 1024 * 1024   # per input buffer; double-buffered by Pallas
_VMEM_LIMIT = 32 * 1024 * 1024       # scoped VMEM, safe on v5e/v6e/v7x
_MIN_PALLAS_BYTES = 256 * 1024       # below this a fused XLA reduce is cheaper


def _round_down(x, m):
    return (x // m) * m


def _pow_elems(x, p):
    if p == 2:
        return x * x
    if p == 1:
        return jnp.abs(x)
    return jnp.abs(x) ** p


def _powsum_kernel(x_ref, o_ref, *, p, bm, acc_rows, bpc, nblocks, valid_last,
                   has_tail_skip):
    """Accumulate sum(|x|^p) of this chunk's row blocks into the resident
    (acc_rows, L) output block (one partial slab per chunk)."""
    c = pl.program_id(0)   # parallel chunk axis (megacore on v7x)
    i = pl.program_id(1)   # sequential reduction axis

    @pl.when(i == 0)
    def _():
        o_ref[...] = jnp.zeros_like(o_ref)

    v = _pow_elems(x_ref[...].astype(jnp.float32), p)
    lanes = v.shape[-1]

    def accum(vals):
        if bm % acc_rows == 0:
            # Row-group reduce: acc_rows/8 independent vreg add chains per lane
            # column (pure VPU), then a single add into the resident slab.
            o_ref[...] = o_ref[...] + vals.reshape(
                bm // acc_rows, acc_rows, lanes).sum(axis=0)
        else:
            # Tiny table (< 8 rows, single-block grid): one sublane reduce.
            o_ref[0:1, :] = o_ref[0:1, :] + jnp.sum(vals, axis=0, keepdims=True)

    blk = c * bpc + i                 # global row-block index
    ragged = valid_last != bm

    if ragged:
        # Mask only the last (global) block; blocks past the end are skipped.
        @pl.when(blk < nblocks - 1)
        def _():
            accum(v)

        @pl.when(blk == nblocks - 1)
        def _():
            r = jax.lax.broadcasted_iota(jnp.int32, v.shape, 0)
            accum(jnp.where(r < valid_last, v, 0.0))
    elif has_tail_skip:
        @pl.when(blk < nblocks)
        def _():
            accum(v)
    else:
        accum(v)


def _powsum_jnp(x, p):
    return jnp.sum(_pow_elems(x.astype(jnp.float32), p))


def _powsum_pallas(x2, *, p, max_block_bytes=_MAX_BLOCK_BYTES):
    """sum(|x|^p) of a 2-D view (rows, L); L (full last dim) is the lane axis."""
    rows, lane = x2.shape
    itemsize = jnp.dtype(x2.dtype).itemsize
    lane_pad = -(-lane // _LANES) * _LANES            # VMEM lane padding
    row_bytes = lane_pad * itemsize
    row_mult = 8 * max(1, 4 // itemsize)              # sublane packing multiple

    # --- block rows (byte budget; 64-row granularity for the wide accumulator) ---
    budget_rows = max(row_mult, _round_down(max_block_bytes // row_bytes, row_mult))
    if rows < row_mult:
        bm = rows                                     # tiny: whole array, 1 block
    elif rows < 64 or budget_rows < 64:
        bm = min(budget_rows, _round_down(rows, row_mult))
    else:
        bm = min(_round_down(budget_rows, 64), _round_down(rows, 64))
    nblocks = pl.cdiv(rows, bm)
    valid_last = rows - (nblocks - 1) * bm

    # --- accumulator width (independent VALU chains) ---
    if bm % 8 != 0:
        acc_rows = 8
    else:
        acc_rows = 64
        while bm % acc_rows != 0:
            acc_rows //= 2

    # --- leading parallel chunk axis (both TensorCores on v7x) ---
    num_chunks = 2 if nblocks >= 2 else 1
    bpc = pl.cdiv(nblocks, num_chunks)
    has_tail_skip = num_chunks * bpc != nblocks

    def in_index_map(c, i):
        # Clamp so tail "skip" steps re-read a valid block (never accumulated).
        return (jnp.minimum(c * bpc + i, nblocks - 1), 0)

    kernel = functools.partial(
        _powsum_kernel, p=p, bm=bm, acc_rows=acc_rows, bpc=bpc,
        nblocks=nblocks, valid_last=valid_last, has_tail_skip=has_tail_skip)

    out = pl.pallas_call(
        kernel,
        out_shape=jax.ShapeDtypeStruct((num_chunks, acc_rows, lane), jnp.float32),
        grid=(num_chunks, bpc),
        in_specs=[pl.BlockSpec((bm, lane), in_index_map)],
        out_specs=pl.BlockSpec((None, acc_rows, lane), lambda c, i: (c, 0, 0)),
        compiler_params=pltpu.CompilerParams(
            dimension_semantics=("parallel", "arbitrary"),
            vmem_limit_bytes=_VMEM_LIMIT,
        ),
        cost_estimate=pl.CostEstimate(
            flops=2 * rows * lane,
            transcendentals=0 if p in (1, 2) else rows * lane,
            bytes_accessed=rows * lane * itemsize
            + num_chunks * acc_rows * lane * 4,
        ),
    )(x2)
    # Tiny cross-lane reduce of the per-chunk partial slabs (wrapper side).
    return jnp.sum(out)


def _powsum(x, *, p=2, min_pallas_bytes=_MIN_PALLAS_BYTES,
            max_block_bytes=_MAX_BLOCK_BYTES):
    """sum(|x|^p) over all elements; Pallas for large tables, XLA for tiny ones."""
    x = jnp.asarray(x)
    n = x.size
    itemsize = jnp.dtype(x.dtype).itemsize
    if n == 0:
        return jnp.zeros((), jnp.float32)
    if n * itemsize < min_pallas_bytes:
        return _powsum_jnp(x, p)                      # launch-overhead fallback

    # Zero-copy 2-D view: lane-dense when possible, else full last dim as lanes.
    if n % _LANES == 0:
        x2 = x.reshape(n // _LANES, _LANES)
    elif x.ndim >= 2:
        x2 = x.reshape(-1, x.shape[-1])
    else:
        x2 = x.reshape(1, n)

    lane_pad = -(-x2.shape[1] // _LANES) * _LANES
    row_mult = 8 * max(1, 4 // itemsize)
    if lane_pad * itemsize * row_mult > max_block_bytes:
        return _powsum_jnp(x, p)                      # pathologically wide rows
    return _powsum_pallas(x2, p=p, max_block_bytes=max_block_bytes)


def emb_loss(*embeddings, norm=2, require_pow=False,
             min_pallas_bytes=_MIN_PALLAS_BYTES):
    """Pallas-backed EmbLoss.forward.  Returns a shape-(1,) float32 array."""
    batch = embeddings[-1].shape[0]
    total = jnp.zeros((), jnp.float32)
    for emb in embeddings:
        ps = _powsum(emb, p=norm, min_pallas_bytes=min_pallas_bytes)
        if require_pow:
            total = total + ps                        # ||x||_p ** p == sum(|x|^p)
        elif norm == 2:
            total = total + jnp.sqrt(ps)
        else:
            total = total + ps ** (1.0 / norm)
    total = total / batch
    if require_pow:
        total = total / norm
    return total.reshape((1,))


def _reference(*embeddings, norm=2, require_pow=False):
    """Pure-JAX reference matching the PyTorch module."""
    batch = embeddings[-1].shape[0]
    loss = jnp.zeros((1,), jnp.float32)
    for emb in embeddings:
        n = jnp.sum(jnp.abs(emb.astype(jnp.float32)) ** norm) ** (1.0 / norm)
        loss = loss + (n ** norm if require_pow else n)
    loss = loss / batch
    if require_pow:
        loss = loss / norm
    return loss


if __name__ == "__main__":
    key = jax.random.PRNGKey(0)
    k1, k2, k3, k4 = jax.random.split(key, 4)

    # Small deterministic "embedding tables" (MacridVAE-style user/item/category).
    user_emb = jax.random.normal(k1, (300, 64), jnp.float32) * 0.1    # lane-dense view
    item_emb = jax.random.normal(k2, (16, 32), jnp.float32) * 0.1     # tiny table
    cate_emb = jax.random.normal(k3, (70, 64), jnp.float32) * 0.1
    wide_emb = jax.random.normal(k4, (1037, 96), jnp.float32) * 0.05  # 2-D-direct, ragged, 2 chunks
    embs = (user_emb, item_emb, cate_emb, wide_emb)

    # End-to-end (default dispatch: large tables through the Pallas kernel).
    out = emb_loss(*embs, norm=2, require_pow=False)
    out_pow = emb_loss(*embs, norm=2, require_pow=True)
    # Force every table through the Pallas kernel as well.
    out_all = emb_loss(*embs, norm=2, require_pow=False, min_pallas_bytes=0)
    jax.block_until_ready((out, out_pow, out_all))

    ref = _reference(*embs, norm=2, require_pow=False)
    ref_pow = _reference(*embs, norm=2, require_pow=True)

    assert out.shape == (1,) and out_pow.shape == (1,) and out_all.shape == (1,)
    assert jnp.allclose(out, ref, rtol=1e-4, atol=1e-6), (out, ref)
    assert jnp.allclose(out_pow, ref_pow, rtol=1e-4, atol=1e-6), (out_pow, ref_pow)
    assert jnp.allclose(out_all, ref, rtol=1e-4, atol=1e-6), (out_all, ref)

    # Direct kernel checks exercising every in-kernel path: multi-block +
    # ragged + tail-skip (small block budget), tiny (<8 rows), norm=1, and the
    # 2-D-direct lane view.
    checks = [
        (user_emb, 2, 16 * 1024),                    # bm=32, 5 blocks, 2 chunks, ragged + skip
        (wide_emb, 2, _MAX_BLOCK_BYTES),             # 2-D direct view, ragged, 2 chunks
        (jax.random.normal(k1, (3, 50), jnp.float32), 2, _MAX_BLOCK_BYTES),  # tiny path
        (cate_emb, 1, _MAX_BLOCK_BYTES),             # norm=1
    ]
    for arr, p, mbb in checks:
        view = (arr.reshape(arr.size // _LANES, _LANES)
                if arr.size % _LANES == 0 else arr.reshape(-1, arr.shape[-1]))
        got = _powsum_pallas(view, p=p, max_block_bytes=mbb)
        want = _powsum_jnp(arr, p)
        assert jnp.allclose(got, want, rtol=1e-4, atol=1e-6), (p, got, want)

    print("KERNEL_OK")
</pallas_src>

<mosaic_0001>
module attributes {stable_mosaic.version = 11 : i64} {
  func.func @_powsum_kernel(%arg0: i32, %arg1: i32, %arg2: memref<1024x96xf32, #tpu.memory_space<vmem>>, %arg3: memref<1x64x96xf32, #tpu.memory_space<vmem>>) attributes {dimension_semantics = [#tpu.dimension_semantics<parallel>, #tpu.dimension_semantics<arbitrary>], iteration_bounds = array<i64: 2, 1>, scalar_prefetch = 0 : i64, scratch_operands = 0 : i64, tpu.core_type = #tpu.core_type<tc>, window_params = [{transform_indices = @transform_0, window_bounds = array<i64: 1024, 96>}, {transform_indices = @transform_1, window_bounds = array<i64: 1, 64, 96>}]} {
    %c0_i32 = arith.constant 0 : i32
    %0 = arith.cmpi eq, %arg1, %c0_i32 : i32
    %1 = arith.extui %0 : i1 to i32
    %c0_i32_0 = arith.constant 0 : i32
    %2 = arith.cmpi ne, %1, %c0_i32_0 : i32
    scf.if %2 {
      %cst = arith.constant 0.000000e+00 : f32
      %13 = vector.broadcast %cst : f32 to vector<64x96xf32>
      %c0_6 = arith.constant 0 : index
      %c0_7 = arith.constant 0 : index
      %c0_8 = arith.constant 0 : index
      %14 = vector.load %arg3[%c0_6, %c0_7, %c0_8] : memref<1x64x96xf32, #tpu.memory_space<vmem>>, vector<1x64x96xf32>
      %15 = vector.shape_cast %14 : vector<1x64x96xf32> to vector<64x96xf32>
      %16 = vector.shape_cast %13 : vector<64x96xf32> to vector<1x64x96xf32>
      tpu.vector_store %arg3[%c0_6, %c0_7, %c0_8], %16 {strides = array<i32>} : memref<1x64x96xf32, #tpu.memory_space<vmem>>, vector<1x64x96xf32>,
    } else {
    }
    %c0 = arith.constant 0 : index
    %c0_1 = arith.constant 0 : index
    %3 = vector.load %arg2[%c0, %c0_1] : memref<1024x96xf32, #tpu.memory_space<vmem>>, vector<1024x96xf32>
    %4 = arith.mulf %3, %3 : vector<1024x96xf32>
    %c1_i32 = arith.constant 1 : i32
    %5 = arith.muli %arg0, %c1_i32 : i32
    %6 = arith.addi %5, %arg1 : i32
    %c1_i32_2 = arith.constant 1 : i32
    %7 = arith.cmpi slt, %6, %c1_i32_2 : i32
    %8 = arith.extui %7 : i1 to i32
    %c0_i32_3 = arith.constant 0 : i32
    %9 = arith.cmpi ne, %8, %c0_i32_3 : i32
    scf.if %9 {
      %c0_6 = arith.constant 0 : index
      %c0_7 = arith.constant 0 : index
      %c0_8 = arith.constant 0 : index
      %13 = vector.load %arg3[%c0_6, %c0_7, %c0_8] : memref<1x64x96xf32, #tpu.memory_space<vmem>>, vector<1x64x96xf32>
      %14 = vector.shape_cast %13 : vector<1x64x96xf32> to vector<64x96xf32>
      %15 = vector.shape_cast %4 : vector<1024x96xf32> to vector<16x64x96xf32>
      %cst = arith.constant dense<0.000000e+00> : vector<64x96xf32>
      %16 = vector.multi_reduction <add>, %15, %cst [0] : vector<16x64x96xf32> to vector<64x96xf32>
      %17 = arith.addf %14, %16 : vector<64x96xf32>
      %c0_9 = arith.constant 0 : index
      %c0_10 = arith.constant 0 : index
      %c0_11 = arith.constant 0 : index
      %18 = vector.load %arg3[%c0_9, %c0_10, %c0_11] : memref<1x64x96xf32, #tpu.memory_space<vmem>>, vector<1x64x96xf32>
      %19 = vector.shape_cast %18 : vector<1x64x96xf32> to vector<64x96xf32>
      %20 = vector.shape_cast %17 : vector<64x96xf32> to vector<1x64x96xf32>
      tpu.vector_store %arg3[%c0_9, %c0_10, %c0_11], %20 {strides = array<i32>} : memref<1x64x96xf32, #tpu.memory_space<vmem>>, vector<1x64x96xf32>,
    } else {
    }
    %c1_i32_4 = arith.constant 1 : i32
    %10 = arith.cmpi eq, %6, %c1_i32_4 : i32
    %11 = arith.extui %10 : i1 to i32
    %c0_i32_5 = arith.constant 0 : i32
    %12 = arith.cmpi ne, %11, %c0_i32_5 : i32
    scf.if %12 {
      %13 = tpu.iota {dimensions = array<i32: 0>} : vector<1024x96xi32>
      %c13_i32 = arith.constant 13 : i32
      %14 = vector.broadcast %c13_i32 : i32 to vector<1024x96xi32>
      %15 = arith.cmpi slt, %13, %14 : vector<1024x96xi32>
      %cst = arith.constant 0.000000e+00 : f32
      %16 = vector.broadcast %cst : f32 to vector<1024x96xf32>
      %17 = arith.select %15, %4, %16 : vector<1024x96xi1>, vector<1024x96xf32>
      %c0_6 = arith.constant 0 : index
      %c0_7 = arith.constant 0 : index
      %c0_8 = arith.constant 0 : index
      %18 = vector.load %arg3[%c0_6, %c0_7, %c0_8] : memref<1x64x96xf32, #tpu.memory_space<vmem>>, vector<1x64x96xf32>
      %19 = vector.shape_cast %18 : vector<1x64x96xf32> to vector<64x96xf32>
      %20 = vector.shape_cast %17 : vector<1024x96xf32> to vector<16x64x96xf32>
      %cst_9 = arith.constant dense<0.000000e+00> : vector<64x96xf32>
      %21 = vector.multi_reduction <add>, %20, %cst_9 [0] : vector<16x64x96xf32> to vector<64x96xf32>
      %22 = arith.addf %19, %21 : vector<64x96xf32>
      %c0_10 = arith.constant 0 : index
      %c0_11 = arith.constant 0 : index
      %c0_12 = arith.constant 0 : index
      %23 = vector.load %arg3[%c0_10, %c0_11, %c0_12] : memref<1x64x96xf32, #tpu.memory_space<vmem>>, vector<1x64x96xf32>
      %24 = vector.shape_cast %23 : vector<1x64x96xf32> to vector<64x96xf32>
      %25 = vector.shape_cast %22 : vector<64x96xf32> to vector<1x64x96xf32>
      tpu.vector_store %arg3[%c0_10, %c0_11, %c0_12], %25 {strides = array<i32>} : memref<1x64x96xf32, #tpu.memory_space<vmem>>, vector<1x64x96xf32>,
    } else {
    }
    return
  }
  func.func @transform_0(%arg0: i32, %arg1: i32) -> (i32, i32) {
    %c1_i32 = arith.constant 1 : i32
    %0 = arith.muli %arg0, %c1_i32 : i32
    %1 = arith.addi %0, %arg1 : i32
    %c1_i32_0 = arith.constant 1 : i32
    %2 = arith.minsi %1, %c1_i32_0 : i32
    %c0_i32 = arith.constant 0 : i32
    %c0_i32_1 = arith.constant 0 : i32
    return %2, %c0_i32 : i32, i32
  }
  func.func @transform_1(%arg0: i32, %arg1: i32) -> (i32, i32, i32) {
    %c0_i32 = arith.constant 0 : i32
    %c0_i32_0 = arith.constant 0 : i32
    %c0_i32_1 = arith.constant 0 : i32
    return %arg0, %c0_i32, %c0_i32_0 : i32, i32, i32
  }
}

</mosaic_0001>

<llo_original>
// kernel: tpu_custom_call.1
$region0: #{tpu_custom_call.1}
  #allocation0 [shape = 'u32[]', space=smem, size = 0x4, offset = 0x4, fixed_abs, tag = 'smem constant byte address 0x4 - core index']
  #allocation1 [shape = 'u32[144,128]{1,0:T(1,128)}', space=vmem, size = 0x12000, scoped, tag = 'internal scratch']
  %s0 = inlined_call_operand.vmem [shape: f32[1037,96], index: 0, kind: input, shape index: {}]
  %s1 = inlined_call_operand.hbm [shape: f32[2,64,96], index: 1, kind: output, shape index: {}]
  %s2 = sld [smem:[#allocation0]]
  $region49: #{tpu_custom_call.1} parent=0
    _
  %s4 = ssub.s32 1, %s2
  %s5 = scalar_select 0, %s4, %s2
  $region1: #{tpu_custom_call.1} parent=0
    #allocation2 [shape = 'u8[65536]{0}', space=vmem, size = 0x10000, scoped, tag = 'output window, operand 0']
    #allocation3 [shape = 's32[2]{0}', space=sflag, size = 0x8, scoped, tag = 'scoped memory for tpu_custom_call.1']
    %6 = vsyncpa [#allocation3], 0
    %s7 = scalar_lea.sflag [#allocation3], 1
    %8 = vsyncpa %s7, 0
    loop: start=0, step=1, limit=4
    $region2: #{tpu_custom_call.1} parent=1 // loop_pre_header
      _
    $region3: #{tpu_custom_call.1} parent=1 // loop_header
      %s10 = sphi 0, %s14
      %p11 = scmp.ge.s32.totalorder %s10, 4
      %s17 = sphi 0, %s29
      %s18 = sphi 0, %s25
      %s19 = sphi 0, %s17
      %s20 = sphi 0, %s18
      %s21 = sphi 0, %s19
      %s22 = sphi 0, %s20
      %s38 = sphi 0, %s40
      %s41 = sphi 0, %s38
      %s42 = sphi 0, %s41
      %s58 = sphi 0, %s42
      %s64 = sphi 0, %s66
      %s67 = sphi 0, %s64
      %s68 = sphi 0, %s67
      %s84 = sphi 0, %s68
    $region4: #{tpu_custom_call.1} parent=1 // loop_header_branch
      %13 = sbr.rel (%p11) target = $region8
    $region5: #{tpu_custom_call.1} parent=1 // loop_body
      %s15 = ssub.s32 %s10, 1
      %s16 = ssub.s32 %s10, 2
      %s23 = sadd.s32 1, %s18
      %p24 = scmp.ge.s32.totalorder %s23, 1
      %s25 = scalar_select %p24, 0, %s23
      %s26 = sadd.s32 1, %s17
      %s27 = scalar_select %p24, %s26, %s17
      %p28 = scmp.ge.s32.totalorder %s27, 2
      %s29 = scalar_select %p28, 0, %s27
      %s30 = sadd.s32 %s17, %s18
      %p31 = scmp.lt.s32.totalorder %s30, 1
      %s32 = scalar_select %p31, %s30, 1
      %s33 = sadd.s32 %s29, %s25
      %p34 = scmp.lt.s32.totalorder %s33, 1
      %s35 = scalar_select %p34, %s33, 1
      %s36 = ssub.s32 %s32, %s35
      %p37 = scmp.eq.s32.totalorder %s36, 0
      %s39 = sadd.s32 %s38, 1
      %s40 = scalar_select %p37, %s38, %s39
      %p43 = pneg %p37
      %p44 = scmp.eq.s32.totalorder %s10, 1
      %p45 = por %p43, %p44
      %p46 = scmp.ne.s32.totalorder %s38, %s41
      %p47 = scmp.eq.s32.totalorder %s10, 0
      %p48 = por %p46, %p47
      %p49 = scmp.ne.s32.totalorder %s38, %s41
      %p50 = scmp.eq.s32.totalorder %s15, 1
      %p51 = por %p49, %p50
      %p52 = scmp.ne.s32.totalorder %s41, %s42
      %p53 = scmp.eq.s32.totalorder %s15, 0
      %p54 = por %p52, %p53
      %p55 = scmp.ne.s32.totalorder %s41, %s42
      %p56 = scmp.eq.s32.totalorder %s16, 1
      %p57 = por %p55, %p56
      %p59 = scmp.ne.s32.totalorder %s42, %s58
      %p60 = scmp.eq.s32.totalorder %s16, 0
      %p61 = por %p59, %p60
      %s62 = ssub.s32 %s17, %s29
      %p63 = scmp.eq.s32.totalorder %s62, 0
      %s65 = sadd.s32 %s64, 1
      %s66 = scalar_select %p63, %s64, %s65
      %p69 = pneg %p63
      %p70 = scmp.eq.s32.totalorder %s10, 1
      %p71 = por %p69, %p70
      %p72 = scmp.ne.s32.totalorder %s64, %s67
      %p73 = scmp.eq.s32.totalorder %s10, 0
      %p74 = por %p72, %p73
      %p75 = scmp.ne.s32.totalorder %s64, %s67
      %p76 = scmp.eq.s32.totalorder %s15, 1
      %p77 = por %p75, %p76
      %p78 = scmp.ne.s32.totalorder %s67, %s68
      %p79 = scmp.eq.s32.totalorder %s15, 0
      %p80 = por %p78, %p79
      %p81 = scmp.ne.s32.totalorder %s67, %s68
      %p82 = scmp.eq.s32.totalorder %s16, 1
      %p83 = por %p81, %p82
      %p85 = scmp.ne.s32.totalorder %s68, %s84
      %p86 = scmp.eq.s32.totalorder %s16, 0
      %p87 = por %p85, %p86
      %p88 = scmp.le.s32.totalorder 1, %s10
      %p89 = scmp.lt.s32.totalorder %s10, 3
      %p90 = pnand %p88, %p89
      %p91 = pneg %p90
      // Predicated region
      $region9: #{tpu_custom_call.1} parent=5 // pred_check
        _
      $region10: #{tpu_custom_call.1} parent=5 // pred_check_branch
        %93 = sbr.rel (%p90) target = $region12
      $region11: #{tpu_custom_call.1} parent=5 // pred_region
        %s94 = ssub.s32 %s10, 1
      $region12: #{tpu_custom_call.1} parent=5 // pred_fallthru
        _
      %p95 = scmp.lt.s32.totalorder %s10, 2
      // Predicated region
      $region13: #{tpu_custom_call.1} parent=5 // pred_check
        %p96 = pneg %p95
      $region14: #{tpu_custom_call.1} parent=5 // pred_check_branch
        %98 = sbr.rel (%p96) target = $region16
      $region15: #{tpu_custom_call.1} parent=5 // pred_region
        // Predicated region
        $region17: #{tpu_custom_call.1} parent=15 // pred_check
          %p99 = pneg %p48
        $region18: #{tpu_custom_call.1} parent=15 // pred_check_branch
          %101 = sbr.rel (%p99) target = $region20
        $region19: #{tpu_custom_call.1} parent=15 // pred_region
          %s102 = sadd.s32 %s17, %s18
          %p103 = scmp.lt.s32.totalorder %s102, 1
          %s104 = scalar_select %p103, %s102, 1
          %s105 = smul.u32 128, %s104
          %s106 = ssub.s32 130, %s105
          %p107 = scmp.lt.s32.totalorder %s106, 128
          %s108 = scalar_select %p107, %s106, 128
          %s109 = smul.u32 128, %s108
          %p110 = scmp.lt.s32.totalorder %s105, 129
          %s111 = scalar_select %p110, %s105, 129
          %s112 = smul.addr %s111, 8
          %s113 = scalar_lea.vmem %s0, %s112
          %s114 = sadd.s32 %s17, %s18
          %p115 = scmp.lt.s32.totalorder %s114, 1
          %s116 = scalar_select %p115, %s114, 1
          %s117 = smul.u32 128, %s116
          %s118 = ssub.s32 130, %s117
          %p119 = scmp.lt.s32.totalorder %s118, 128
          %s120 = scalar_select %p119, %s118, 128
          %s121 = smul.u32 128, %s120
        $region20: #{tpu_custom_call.1} parent=15 // pred_fallthru
          _
      $region16: #{tpu_custom_call.1} parent=5 // pred_fallthru
        _
      %p122 = scmp.le.s32.totalorder 1, %s10
      %p123 = scmp.lt.s32.totalorder %s10, 3
      %p124 = pnand %p122, %p123
      %p125 = pneg %p124
      // Predicated region
      $region21: #{tpu_custom_call.1} parent=5 // pred_check
        _
      $region22: #{tpu_custom_call.1} parent=5 // pred_check_branch
        %127 = sbr.rel (%p124) target = $region24
      $region23: #{tpu_custom_call.1} parent=5 // pred_region
        %s128 = ssub.s32 %s10, 1
        %s129 = sadd.s32 %s19, %s20
        %p130 = scmp.lt.s32.totalorder %s129, 1
        %s131 = scalar_select %p130, %s129, 1
        %s132 = smul.u32 128, %s131
        %s133 = ssub.s32 130, %s132
        %p134 = scmp.lt.s32.totalorder %s133, 128
        %s135 = scalar_select %p134, %s133, 128
        %s136 = smul.u32 128, %s135
        %p137 = scmp.lt.s32.totalorder %s132, 129
        %s138 = scalar_select %p137, %s132, 129
        %s139 = smul.addr %s138, 8
        %s140 = scalar_lea.vmem %s0, %s139
        %p141 = pneg %p54
        %p142 = pneg %p51
        %p143 = pneg %p80
        %p144 = pneg %p77
        %s145 = sand.u32 %s67, 1
        %s146 = scalar_lea.sflag [#allocation3], %s145
        %s147 = sand.u32 %s67, 1
        %s148 = smul.addr %s147, 64
        %s149 = scalar_lea.vmem [#allocation2], %s148
        %s150 = sadd.s32 %s19, %s20
        %p151 = scmp.lt.s32.totalorder %s150, 1
        %s152 = scalar_select %p151, %s150, 1
        %s153 = smul.u32 128, %s152
        %s154 = ssub.s32 130, %s153
        %p155 = scmp.lt.s32.totalorder %s154, 128
        %s156 = scalar_select %p155, %s154, 128
        %s157 = smul.u32 128, %s156
        %p158 = scmp.lt.s32.totalorder %s153, 129
        %s159 = scalar_select %p158, %s153, 129
        %s160 = smul.addr %s159, 8
        %s161 = scalar_lea.vmem %s0, %s160
        %s162 = sadd.s32 %s19, %s20
        %p163 = scmp.lt.s32.totalorder %s162, 1
        %s164 = scalar_select %p163, %s162, 1
        %s165 = smul.u32 128, %s164
        %s166 = ssub.s32 130, %s165
        %p167 = scmp.lt.s32.totalorder %s166, 128
        %s168 = scalar_select %p167, %s166, 128
        %s169 = smul.u32 128, %s168
        %p170 = scmp.eq.s32.totalorder %s20, 0
        // Predicated region
        $region25: #{tpu_custom_call.1} parent=23 // pred_check
          %p171 = pneg %p170
        $region26: #{tpu_custom_call.1} parent=23 // pred_check_branch
          %173 = sbr.rel (%p171) target = $region28
        $region27: #{tpu_custom_call.1} parent=23 // pred_region
          %vm174 = vcmask 785408
          %175 = vst.msk [vmem:[%s149] sm:$0xff] %vm174, 0.0
          %176 = vst.msk [vmem:[%s149 + $0x8] sm:$0xff] %vm174, 0.0
          %177 = vst.msk [vmem:[%s149 + $0x10] sm:$0xff] %vm174, 0.0
          %178 = vst.msk [vmem:[%s149 + $0x18] sm:$0xff] %vm174, 0.0
          %179 = vst.msk [vmem:[%s149 + $0x20] sm:$0xff] %vm174, 0.0
          %180 = vst.msk [vmem:[%s149 + $0x28] sm:$0xff] %vm174, 0.0
          %181 = vst.msk [vmem:[%s149 + $0x30] sm:$0xff] %vm174, 0.0
          %182 = vst.msk [vmem:[%s149 + $0x38] sm:$0xff] %vm174, 0.0
        $region28: #{tpu_custom_call.1} parent=23 // pred_fallthru
          _
        %v183 = vld [vmem:[%s161] sm:$0xff]
        %v184 = vld [vmem:[%s161 + $0x8] sm:$0xff]
        %v185 = vld [vmem:[%s161 + $0x10] sm:$0xff]
        %v186 = vld [vmem:[%s161 + $0x18] sm:$0xff]
        %v187 = vld [vmem:[%s161 + $0x20] sm:$0xff]
        %v188 = vld [vmem:[%s161 + $0x28] sm:$0xff]
        %v189 = vld [vmem:[%s161 + $0x30] sm:$0xff]
        %v190 = vld [vmem:[%s161 + $0x38] sm:$0xff]
        %v191 = vld [vmem:[%s161 + $0x40] sm:$0xff]
        %v192 = vld [vmem:[%s161 + $0x48] sm:$0xff]
        %v193 = vld [vmem:[%s161 + $0x50] sm:$0xff]
        %v194 = vld [vmem:[%s161 + $0x58] sm:$0xff]
        %v195 = vld [vmem:[%s161 + $0x60] sm:$0xff]
        %v196 = vld [vmem:[%s161 + $0x68] sm:$0xff]
        %v197 = vld [vmem:[%s161 + $0x70] sm:$0xff]
        %v198 = vld [vmem:[%s161 + $0x78] sm:$0xff]
        %v199 = vld [vmem:[%s161 + $0x80] sm:$0xff]
        %v200 = vld [vmem:[%s161 + $0x88] sm:$0xff]
        %v201 = vld [vmem:[%s161 + $0x90] sm:$0xff]
        %v202 = vld [vmem:[%s161 + $0x98] sm:$0xff]
        %v203 = vld [vmem:[%s161 + $0xa0] sm:$0xff]
        %v204 = vld [vmem:[%s161 + $0xa8] sm:$0xff]
        %v205 = vld [vmem:[%s161 + $0xb0] sm:$0xff]
        %v206 = vld [vmem:[%s161 + $0xb8] sm:$0xff]
        %v207 = vld [vmem:[%s161 + $0xc0] sm:$0xff]
        %v208 = vld [vmem:[%s161 + $0xc8] sm:$0xff]
        %v209 = vld [vmem:[%s161 + $0xd0] sm:$0xff]
        %v210 = vld [vmem:[%s161 + $0xd8] sm:$0xff]
        %v211 = vld [vmem:[%s161 + $0xe0] sm:$0xff]
        %v212 = vld [vmem:[%s161 + $0xe8] sm:$0xff]
        %v213 = vld [vmem:[%s161 + $0xf0] sm:$0xff]
        %v214 = vld [vmem:[%s161 + $0xf8] sm:$0xff]
        %v215 = vld [vmem:[%s161 + $0x100] sm:$0xff]
        %v216 = vld [vmem:[%s161 + $0x108] sm:$0xff]
        %v217 = vld [vmem:[%s161 + $0x110] sm:$0xff]
        %v218 = vld [vmem:[%s161 + $0x118] sm:$0xff]
        %v219 = vld [vmem:[%s161 + $0x120] sm:$0xff]
        %v220 = vld [vmem:[%s161 + $0x128] sm:$0xff]
        %v221 = vld [vmem:[%s161 + $0x130] sm:$0xff]
        %v222 = vld [vmem:[%s161 + $0x138] sm:$0xff]
        %v223 = vld [vmem:[%s161 + $0x140] sm:$0xff]
        %v224 = vld [vmem:[%s161 + $0x148] sm:$0xff]
        %v225 = vld [vmem:[%s161 + $0x150] sm:$0xff]
        %v226 = vld [vmem:[%s161 + $0x158] sm:$0xff]
        %v227 = vld [vmem:[%s161 + $0x160] sm:$0xff]
        %v228 = vld [vmem:[%s161 + $0x168] sm:$0xff]
        %v229 = vld [vmem:[%s161 + $0x170] sm:$0xff]
        %v230 = vld [vmem:[%s161 + $0x178] sm:$0xff]
        %v231 = vld [vmem:[%s161 + $0x180] sm:$0xff]
        %v232 = vld [vmem:[%s161 + $0x188] sm:$0xff]
        %v233 = vld [vmem:[%s161 + $0x190] sm:$0xff]
        %v234 = vld [vmem:[%s161 + $0x198] sm:$0xff]
        %v235 = vld [vmem:[%s161 + $0x1a0] sm:$0xff]
        %v236 = vld [vmem:[%s161 + $0x1a8] sm:$0xff]
        %v237 = vld [vmem:[%s161 + $0x1b0] sm:$0xff]
        %v238 = vld [vmem:[%s161 + $0x1b8] sm:$0xff]
        %v239 = vld [vmem:[%s161 + $0x1c0] sm:$0xff]
        %v240 = vld [vmem:[%s161 + $0x1c8] sm:$0xff]
        %v241 = vld [vmem:[%s161 + $0x1d0] sm:$0xff]
        %v242 = vld [vmem:[%s161 + $0x1d8] sm:$0xff]
        %v243 = vld [vmem:[%s161 + $0x1e0] sm:$0xff]
        %v244 = vld [vmem:[%s161 + $0x1e8] sm:$0xff]
        %v245 = vld [vmem:[%s161 + $0x1f0] sm:$0xff]
        %v246 = vld [vmem:[%s161 + $0x1f8] sm:$0xff]
        %v247 = vld [vmem:[%s161 + $0x200] sm:$0xff]
        %v248 = vld [vmem:[%s161 + $0x208] sm:$0xff]
        %v249 = vld [vmem:[%s161 + $0x210] sm:$0xff]
        %v250 = vld [vmem:[%s161 + $0x218] sm:$0xff]
        %v251 = vld [vmem:[%s161 + $0x220] sm:$0xff]
        %v252 = vld [vmem:[%s161 + $0x228] sm:$0xff]
        %v253 = vld [vmem:[%s161 + $0x230] sm:$0xff]
        %v254 = vld [vmem:[%s161 + $0x238] sm:$0xff]
        %v255 = vld [vmem:[%s161 + $0x240] sm:$0xff]
        %v256 = vld [vmem:[%s161 + $0x248] sm:$0xff]
        %v257 = vld [vmem:[%s161 + $0x250] sm:$0xff]
        %v258 = vld [vmem:[%s161 + $0x258] sm:$0xff]
        %v259 = vld [vmem:[%s161 + $0x260] sm:$0xff]
        %v260 = vld [vmem:[%s161 + $0x268] sm:$0xff]
        %v261 = vld [vmem:[%s161 + $0x270] sm:$0xff]
        %v262 = vld [vmem:[%s161 + $0x278] sm:$0xff]
        %v263 = vld [vmem:[%s161 + $0x280] sm:$0xff]
        %v264 = vld [vmem:[%s161 + $0x288] sm:$0xff]
        %v265 = vld [vmem:[%s161 + $0x290] sm:$0xff]
        %v266 = vld [vmem:[%s161 + $0x298] sm:$0xff]
        %v267 = vld [vmem:[%s161 + $0x2a0] sm:$0xff]
        %v268 = vld [vmem:[%s161 + $0x2a8] sm:$0xff]
        %v269 = vld [vmem:[%s161 + $0x2b0] sm:$0xff]
        %v270 = vld [vmem:[%s161 + $0x2b8] sm:$0xff]
        %v271 = vld [vmem:[%s161 + $0x2c0] sm:$0xff]
        %v272 = vld [vmem:[%s161 + $0x2c8] sm:$0xff]
        %v273 = vld [vmem:[%s161 + $0x2d0] sm:$0xff]
        %v274 = vld [vmem:[%s161 + $0x2d8] sm:$0xff]
        %v275 = vld [vmem:[%s161 + $0x2e0] sm:$0xff]
        %v276 = vld [vmem:[%s161 + $0x2e8] sm:$0xff]
        %v277 = vld [vmem:[%s161 + $0x2f0] sm:$0xff]
        %v278 = vld [vmem:[%s161 + $0x2f8] sm:$0xff]
        %v279 = vld [vmem:[%s161 + $0x300] sm:$0xff]
        %v280 = vld [vmem:[%s161 + $0x308] sm:$0xff]
        %v281 = vld [vmem:[%s161 + $0x310] sm:$0xff]
        %v282 = vld [vmem:[%s161 + $0x318] sm:$0xff]
        %v283 = vld [vmem:[%s161 + $0x320] sm:$0xff]
        %v284 = vld [vmem:[%s161 + $0x328] sm:$0xff]
        %v285 = vld [vmem:[%s161 + $0x330] sm:$0xff]
        %v286 = vld [vmem:[%s161 + $0x338] sm:$0xff]
        %v287 = vld [vmem:[%s161 + $0x340] sm:$0xff]
        %v288 = vld [vmem:[%s161 + $0x348] sm:$0xff]
        %v289 = vld [vmem:[%s161 + $0x350] sm:$0xff]
        %v290 = vld [vmem:[%s161 + $0x358] sm:$0xff]
        %v291 = vld [vmem:[%s161 + $0x360] sm:$0xff]
        %v292 = vld [vmem:[%s161 + $0x368] sm:$0xff]
        %v293 = vld [vmem:[%s161 + $0x370] sm:$0xff]
        %v294 = vld [vmem:[%s161 + $0x378] sm:$0xff]
        %v295 = vld [vmem:[%s161 + $0x380] sm:$0xff]
        %v296 = vld [vmem:[%s161 + $0x388] sm:$0xff]
        %v297 = vld [vmem:[%s161 + $0x390] sm:$0xff]
        %v298 = vld [vmem:[%s161 + $0x398] sm:$0xff]
        %v299 = vld [vmem:[%s161 + $0x3a0] sm:$0xff]
        %v300 = vld [vmem:[%s161 + $0x3a8] sm:$0xff]
        %v301 = vld [vmem:[%s161 + $0x3b0] sm:$0xff]
        %v302 = vld [vmem:[%s161 + $0x3b8] sm:$0xff]
        %v303 = vld [vmem:[%s161 + $0x3c0] sm:$0xff]
        %v304 = vld [vmem:[%s161 + $0x3c8] sm:$0xff]
        %v305 = vld [vmem:[%s161 + $0x3d0] sm:$0xff]
        %v306 = vld [vmem:[%s161 + $0x3d8] sm:$0xff]
        %v307 = vld [vmem:[%s161 + $0x3e0] sm:$0xff]
        %v308 = vld [vmem:[%s161 + $0x3e8] sm:$0xff]
        %v309 = vld [vmem:[%s161 + $0x3f0] sm:$0xff]
        %v310 = vld [vmem:[%s161 + $0x3f8] sm:$0xff]
        %v311 = vmul.f32 %v183, %v183
        %v312 = vmul.f32 %v184, %v184
        %v313 = vmul.f32 %v185, %v185
        %v314 = vmul.f32 %v186, %v186
        %v315 = vmul.f32 %v187, %v187
        %v316 = vmul.f32 %v188, %v188
        %v317 = vmul.f32 %v189, %v189
        %v318 = vmul.f32 %v190, %v190
        %v319 = vmul.f32 %v191, %v191
        %v320 = vmul.f32 %v192, %v192
        %v321 = vmul.f32 %v193, %v193
        %v322 = vmul.f32 %v194, %v194
        %v323 = vmul.f32 %v195, %v195
        %v324 = vmul.f32 %v196, %v196
        %v325 = vmul.f32 %v197, %v197
        %v326 = vmul.f32 %v198, %v198
        %v327 = vmul.f32 %v199, %v199
        %v328 = vmul.f32 %v200, %v200
        %v329 = vmul.f32 %v201, %v201
        %v330 = vmul.f32 %v202, %v202
        %v331 = vmul.f32 %v203, %v203
        %v332 = vmul.f32 %v204, %v204
        %v333 = vmul.f32 %v205, %v205
        %v334 = vmul.f32 %v206, %v206
        %v335 = vmul.f32 %v207, %v207
        %v336 = vmul.f32 %v208, %v208
        %v337 = vmul.f32 %v209, %v209
        %v338 = vmul.f32 %v210, %v210
        %v339 = vmul.f32 %v211, %v211
        %v340 = vmul.f32 %v212, %v212
        %v341 = vmul.f32 %v213, %v213
        %v342 = vmul.f32 %v214, %v214
        %v343 = vmul.f32 %v215, %v215
        %v344 = vmul.f32 %v216, %v216
        %v345 = vmul.f32 %v217, %v217
        %v346 = vmul.f32 %v218, %v218
        %v347 = vmul.f32 %v219, %v219
        %v348 = vmul.f32 %v220, %v220
        %v349 = vmul.f32 %v221, %v221
        %v350 = vmul.f32 %v222, %v222
        %v351 = vmul.f32 %v223, %v223
        %v352 = vmul.f32 %v224, %v224
        %v353 = vmul.f32 %v225, %v225
        %v354 = vmul.f32 %v226, %v226
        %v355 = vmul.f32 %v227, %v227
        %v356 = vmul.f32 %v228, %v228
        %v357 = vmul.f32 %v229, %v229
        %v358 = vmul.f32 %v230, %v230
        %v359 = vmul.f32 %v231, %v231
        %v360 = vmul.f32 %v232, %v232
        %v361 = vmul.f32 %v233, %v233
        %v362 = vmul.f32 %v234, %v234
        %v363 = vmul.f32 %v235, %v235
        %v364 = vmul.f32 %v236, %v236
        %v365 = vmul.f32 %v237, %v237
        %v366 = vmul.f32 %v238, %v238
        %v367 = vmul.f32 %v239, %v239
        %v368 = vmul.f32 %v240, %v240
        %v369 = vmul.f32 %v241, %v241
        %v370 = vmul.f32 %v242, %v242
        %v371 = vmul.f32 %v243, %v243
        %v372 = vmul.f32 %v244, %v244
        %v373 = vmul.f32 %v245, %v245
        %v374 = vmul.f32 %v246, %v246
        %v375 = vmul.f32 %v247, %v247
        %v376 = vmul.f32 %v248, %v248
        %v377 = vmul.f32 %v249, %v249
        %v378 = vmul.f32 %v250, %v250
        %v379 = vmul.f32 %v251, %v251
        %v380 = vmul.f32 %v252, %v252
        %v381 = vmul.f32 %v253, %v253
        %v382 = vmul.f32 %v254, %v254
        %v383 = vmul.f32 %v255, %v255
        %v384 = vmul.f32 %v256, %v256
        %v385 = vmul.f32 %v257, %v257
        %v386 = vmul.f32 %v258, %v258
        %v387 = vmul.f32 %v259, %v259
        %v388 = vmul.f32 %v260, %v260
        %v389 = vmul.f32 %v261, %v261
        %v390 = vmul.f32 %v262, %v262
        %v391 = vmul.f32 %v263, %v263
        %v392 = vmul.f32 %v264, %v264
        %v393 = vmul.f32 %v265, %v265
        %v394 = vmul.f32 %v266, %v266
        %v395 = vmul.f32 %v267, %v267
        %v396 = vmul.f32 %v268, %v268
        %v397 = vmul.f32 %v269, %v269
        %v398 = vmul.f32 %v270, %v270
        %v399 = vmul.f32 %v271, %v271
        %v400 = vmul.f32 %v272, %v272
        %v401 = vmul.f32 %v273, %v273
        %v402 = vmul.f32 %v274, %v274
        %v403 = vmul.f32 %v275, %v275
        %v404 = vmul.f32 %v276, %v276
        %v405 = vmul.f32 %v277, %v277
        %v406 = vmul.f32 %v278, %v278
        %v407 = vmul.f32 %v279, %v279
        %v408 = vmul.f32 %v280, %v280
        %v409 = vmul.f32 %v281, %v281
        %v410 = vmul.f32 %v282, %v282
        %v411 = vmul.f32 %v283, %v283
        %v412 = vmul.f32 %v284, %v284
        %v413 = vmul.f32 %v285, %v285
        %v414 = vmul.f32 %v286, %v286
        %v415 = vmul.f32 %v287, %v287
        %v416 = vmul.f32 %v288, %v288
        %v417 = vmul.f32 %v289, %v289
        %v418 = vmul.f32 %v290, %v290
        %v419 = vmul.f32 %v291, %v291
        %v420 = vmul.f32 %v292, %v292
        %v421 = vmul.f32 %v293, %v293
        %v422 = vmul.f32 %v294, %v294
        %v423 = vmul.f32 %v295, %v295
        %v424 = vmul.f32 %v296, %v296
        %v425 = vmul.f32 %v297, %v297
        %v426 = vmul.f32 %v298, %v298
        %v427 = vmul.f32 %v299, %v299
        %v428 = vmul.f32 %v300, %v300
        %v429 = vmul.f32 %v301, %v301
        %v430 = vmul.f32 %v302, %v302
        %v431 = vmul.f32 %v303, %v303
        %v432 = vmul.f32 %v304, %v304
        %v433 = vmul.f32 %v305, %v305
        %v434 = vmul.f32 %v306, %v306
        %v435 = vmul.f32 %v307, %v307
        %v436 = vmul.f32 %v308, %v308
        %v437 = vmul.f32 %v309, %v309
        %v438 = vmul.f32 %v310, %v310
        %s439 = sadd.s32 %s19, %s20
        %p440 = scmp.lt.s32.totalorder %s439, 1
        // Predicated region
        $region29: #{tpu_custom_call.1} parent=23 // pred_check
          %p441 = pneg %p440
        $region30: #{tpu_custom_call.1} parent=23 // pred_check_branch
          %443 = sbr.rel (%p441) target = $region32
        $region31: #{tpu_custom_call.1} parent=23 // pred_region
          %v444 = vld [vmem:[%s149] sm:$0xff]
          %v445 = vld [vmem:[%s149 + $0x8] sm:$0xff]
          %v446 = vld [vmem:[%s149 + $0x10] sm:$0xff]
          %v447 = vld [vmem:[%s149 + $0x18] sm:$0xff]
          %v448 = vld [vmem:[%s149 + $0x20] sm:$0xff]
          %v449 = vld [vmem:[%s149 + $0x28] sm:$0xff]
          %v450 = vld [vmem:[%s149 + $0x30] sm:$0xff]
          %v451 = vld [vmem:[%s149 + $0x38] sm:$0xff]
          %vm452 = vcmask 785408
          %v453 = vsel %vm452, %v311, 0.0
          %v454 = vsel %vm452, %v319, 0.0
          %v455 = vadd.f32 %v453, %v454
          %v456 = vsel %vm452, %v327, 0.0
          %v457 = vadd.f32 %v455, %v456
          %v458 = vsel %vm452, %v335, 0.0
          %v459 = vadd.f32 %v457, %v458
          %v460 = vsel %vm452, %v343, 0.0
          %v461 = vadd.f32 %v459, %v460
          %v462 = vsel %vm452, %v351, 0.0
          %v463 = vadd.f32 %v461, %v462
          %v464 = vsel %vm452, %v359, 0.0
          %v465 = vadd.f32 %v463, %v464
          %v466 = vsel %vm452, %v367, 0.0
          %v467 = vadd.f32 %v465, %v466
          %v468 = vsel %vm452, %v375, 0.0
          %v469 = vadd.f32 %v467, %v468
          %v470 = vsel %vm452, %v383, 0.0
          %v471 = vadd.f32 %v469, %v470
          %v472 = vsel %vm452, %v391, 0.0
          %v473 = vadd.f32 %v471, %v472
          %v474 = vsel %vm452, %v399, 0.0
          %v475 = vadd.f32 %v473, %v474
          %v476 = vsel %vm452, %v407, 0.0
          %v477 = vadd.f32 %v475, %v476
          %v478 = vsel %vm452, %v415, 0.0
          %v479 = vadd.f32 %v477, %v478
          %v480 = vsel %vm452, %v423, 0.0
          %v481 = vadd.f32 %v479, %v480
          %v482 = vsel %vm452, %v431, 0.0
          %v483 = vadd.f32 %v481, %v482
          %v484 = vsel %vm452, %v312, 0.0
          %v485 = vsel %vm452, %v320, 0.0
          %v486 = vadd.f32 %v484, %v485
          %v487 = vsel %vm452, %v328, 0.0
          %v488 = vadd.f32 %v486, %v487
          %v489 = vsel %vm452, %v336, 0.0
          %v490 = vadd.f32 %v488, %v489
          %v491 = vsel %vm452, %v344, 0.0
          %v492 = vadd.f32 %v490, %v491
          %v493 = vsel %vm452, %v352, 0.0
          %v494 = vadd.f32 %v492, %v493
          %v495 = vsel %vm452, %v360, 0.0
          %v496 = vadd.f32 %v494, %v495
          %v497 = vsel %vm452, %v368, 0.0
          %v498 = vadd.f32 %v496, %v497
          %v499 = vsel %vm452, %v376, 0.0
          %v500 = vadd.f32 %v498, %v499
          %v501 = vsel %vm452, %v384, 0.0
          %v502 = vadd.f32 %v500, %v501
          %v503 = vsel %vm452, %v392, 0.0
          %v504 = vadd.f32 %v502, %v503
          %v505 = vsel %vm452, %v400, 0.0
          %v506 = vadd.f32 %v504, %v505
          %v507 = vsel %vm452, %v408, 0.0
          %v508 = vadd.f32 %v506, %v507
          %v509 = vsel %vm452, %v416, 0.0
          %v510 = vadd.f32 %v508, %v509
          %v511 = vsel %vm452, %v424, 0.0
          %v512 = vadd.f32 %v510, %v511
          %v513 = vsel %vm452, %v432, 0.0
          %v514 = vadd.f32 %v512, %v513
          %v515 = vsel %vm452, %v313, 0.0
          %v516 = vsel %vm452, %v321, 0.0
          %v517 = vadd.f32 %v515, %v516
          %v518 = vsel %vm452, %v329, 0.0
          %v519 = vadd.f32 %v517, %v518
          %v520 = vsel %vm452, %v337, 0.0
          %v521 = vadd.f32 %v519, %v520
          %v522 = vsel %vm452, %v345, 0.0
          %v523 = vadd.f32 %v521, %v522
          %v524 = vsel %vm452, %v353, 0.0
          %v525 = vadd.f32 %v523, %v524
          %v526 = vsel %vm452, %v361, 0.0
          %v527 = vadd.f32 %v525, %v526
          %v528 = vsel %vm452, %v369, 0.0
          %v529 = vadd.f32 %v527, %v528
          %v530 = vsel %vm452, %v377, 0.0
          %v531 = vadd.f32 %v529, %v530
          %v532 = vsel %vm452, %v385, 0.0
          %v533 = vadd.f32 %v531, %v532
          %v534 = vsel %vm452, %v393, 0.0
          %v535 = vadd.f32 %v533, %v534
          %v536 = vsel %vm452, %v401, 0.0
          %v537 = vadd.f32 %v535, %v536
          %v538 = vsel %vm452, %v409, 0.0
          %v539 = vadd.f32 %v537, %v538
          %v540 = vsel %vm452, %v417, 0.0
          %v541 = vadd.f32 %v539, %v540
          %v542 = vsel %vm452, %v425, 0.0
          %v543 = vadd.f32 %v541, %v542
          %v544 = vsel %vm452, %v433, 0.0
          %v545 = vadd.f32 %v543, %v544
          %v546 = vsel %vm452, %v314, 0.0
          %v547 = vsel %vm452, %v322, 0.0
          %v548 = vadd.f32 %v546, %v547
          %v549 = vsel %vm452, %v330, 0.0
          %v550 = vadd.f32 %v548, %v549
          %v551 = vsel %vm452, %v338, 0.0
          %v552 = vadd.f32 %v550, %v551
          %v553 = vsel %vm452, %v346, 0.0
          %v554 = vadd.f32 %v552, %v553
          %v555 = vsel %vm452, %v354, 0.0
          %v556 = vadd.f32 %v554, %v555
          %v557 = vsel %vm452, %v362, 0.0
          %v558 = vadd.f32 %v556, %v557
          %v559 = vsel %vm452, %v370, 0.0
          %v560 = vadd.f32 %v558, %v559
          %v561 = vsel %vm452, %v378, 0.0
          %v562 = vadd.f32 %v560, %v561
          %v563 = vsel %vm452, %v386, 0.0
          %v564 = vadd.f32 %v562, %v563
          %v565 = vsel %vm452, %v394, 0.0
          %v566 = vadd.f32 %v564, %v565
          %v567 = vsel %vm452, %v402, 0.0
          %v568 = vadd.f32 %v566, %v567
          %v569 = vsel %vm452, %v410, 0.0
          %v570 = vadd.f32 %v568, %v569
          %v571 = vsel %vm452, %v418, 0.0
          %v572 = vadd.f32 %v570, %v571
          %v573 = vsel %vm452, %v426, 0.0
          %v574 = vadd.f32 %v572, %v573
          %v575 = vsel %vm452, %v434, 0.0
          %v576 = vadd.f32 %v574, %v575
          %v577 = vsel %vm452, %v315, 0.0
          %v578 = vsel %vm452, %v323, 0.0
          %v579 = vadd.f32 %v577, %v578
          %v580 = vsel %vm452, %v331, 0.0
          %v581 = vadd.f32 %v579, %v580
          %v582 = vsel %vm452, %v339, 0.0
          %v583 = vadd.f32 %v581, %v582
          %v584 = vsel %vm452, %v347, 0.0
          %v585 = vadd.f32 %v583, %v584
          %v586 = vsel %vm452, %v355, 0.0
          %v587 = vadd.f32 %v585, %v586
          %v588 = vsel %vm452, %v363, 0.0
          %v589 = vadd.f32 %v587, %v588
          %v590 = vsel %vm452, %v371, 0.0
          %v591 = vadd.f32 %v589, %v590
          %v592 = vsel %vm452, %v379, 0.0
          %v593 = vadd.f32 %v591, %v592
          %v594 = vsel %vm452, %v387, 0.0
          %v595 = vadd.f32 %v593, %v594
          %v596 = vsel %vm452, %v395, 0.0
          %v597 = vadd.f32 %v595, %v596
          %v598 = vsel %vm452, %v403, 0.0
          %v599 = vadd.f32 %v597, %v598
          %v600 = vsel %vm452, %v411, 0.0
          %v601 = vadd.f32 %v599, %v600
          %v602 = vsel %vm452, %v419, 0.0
          %v603 = vadd.f32 %v601, %v602
          %v604 = vsel %vm452, %v427, 0.0
          %v605 = vadd.f32 %v603, %v604
          %v606 = vsel %vm452, %v435, 0.0
          %v607 = vadd.f32 %v605, %v606
          %v608 = vsel %vm452, %v316, 0.0
          %v609 = vsel %vm452, %v324, 0.0
          %v610 = vadd.f32 %v608, %v609
          %v611 = vsel %vm452, %v332, 0.0
          %v612 = vadd.f32 %v610, %v611
          %v613 = vsel %vm452, %v340, 0.0
          %v614 = vadd.f32 %v612, %v613
          %v615 = vsel %vm452, %v348, 0.0
          %v616 = vadd.f32 %v614, %v615
          %v617 = vsel %vm452, %v356, 0.0
          %v618 = vadd.f32 %v616, %v617
          %v619 = vsel %vm452, %v364, 0.0
          %v620 = vadd.f32 %v618, %v619
          %v621 = vsel %vm452, %v372, 0.0
          %v622 = vadd.f32 %v620, %v621
          %v623 = vsel %vm452, %v380, 0.0
          %v624 = vadd.f32 %v622, %v623
          %v625 = vsel %vm452, %v388, 0.0
          %v626 = vadd.f32 %v624, %v625
          %v627 = vsel %vm452, %v396, 0.0
          %v628 = vadd.f32 %v626, %v627
          %v629 = vsel %vm452, %v404, 0.0
          %v630 = vadd.f32 %v628, %v629
          %v631 = vsel %vm452, %v412, 0.0
          %v632 = vadd.f32 %v630, %v631
          %v633 = vsel %vm452, %v420, 0.0
          %v634 = vadd.f32 %v632, %v633
          %v635 = vsel %vm452, %v428, 0.0
          %v636 = vadd.f32 %v634, %v635
          %v637 = vsel %vm452, %v436, 0.0
          %v638 = vadd.f32 %v636, %v637
          %v639 = vsel %vm452, %v317, 0.0
          %v640 = vsel %vm452, %v325, 0.0
          %v641 = vadd.f32 %v639, %v640
          %v642 = vsel %vm452, %v333, 0.0
          %v643 = vadd.f32 %v641, %v642
          %v644 = vsel %vm452, %v341, 0.0
          %v645 = vadd.f32 %v643, %v644
          %v646 = vsel %vm452, %v349, 0.0
          %v647 = vadd.f32 %v645, %v646
          %v648 = vsel %vm452, %v357, 0.0
          %v649 = vadd.f32 %v647, %v648
          %v650 = vsel %vm452, %v365, 0.0
          %v651 = vadd.f32 %v649, %v650
          %v652 = vsel %vm452, %v373, 0.0
          %v653 = vadd.f32 %v651, %v652
          %v654 = vsel %vm452, %v381, 0.0
          %v655 = vadd.f32 %v653, %v654
          %v656 = vsel %vm452, %v389, 0.0
          %v657 = vadd.f32 %v655, %v656
          %v658 = vsel %vm452, %v397, 0.0
          %v659 = vadd.f32 %v657, %v658
          %v660 = vsel %vm452, %v405, 0.0
          %v661 = vadd.f32 %v659, %v660
          %v662 = vsel %vm452, %v413, 0.0
          %v663 = vadd.f32 %v661, %v662
          %v664 = vsel %vm452, %v421, 0.0
          %v665 = vadd.f32 %v663, %v664
          %v666 = vsel %vm452, %v429, 0.0
          %v667 = vadd.f32 %v665, %v666
          %v668 = vsel %vm452, %v437, 0.0
          %v669 = vadd.f32 %v667, %v668
          %v670 = vsel %vm452, %v318, 0.0
          %v671 = vsel %vm452, %v326, 0.0
          %v672 = vadd.f32 %v670, %v671
          %v673 = vsel %vm452, %v334, 0.0
          %v674 = vadd.f32 %v672, %v673
          %v675 = vsel %vm452, %v342, 0.0
          %v676 = vadd.f32 %v674, %v675
          %v677 = vsel %vm452, %v350, 0.0
          %v678 = vadd.f32 %v676, %v677
          %v679 = vsel %vm452, %v358, 0.0
          %v680 = vadd.f32 %v678, %v679
          %v681 = vsel %vm452, %v366, 0.0
          %v682 = vadd.f32 %v680, %v681
          %v683 = vsel %vm452, %v374, 0.0
          %v684 = vadd.f32 %v682, %v683
          %v685 = vsel %vm452, %v382, 0.0
          %v686 = vadd.f32 %v684, %v685
          %v687 = vsel %vm452, %v390, 0.0
          %v688 = vadd.f32 %v686, %v687
          %v689 = vsel %vm452, %v398, 0.0
          %v690 = vadd.f32 %v688, %v689
          %v691 = vsel %vm452, %v406, 0.0
          %v692 = vadd.f32 %v690, %v691
          %v693 = vsel %vm452, %v414, 0.0
          %v694 = vadd.f32 %v692, %v693
          %v695 = vsel %vm452, %v422, 0.0
          %v696 = vadd.f32 %v694, %v695
          %v697 = vsel %vm452, %v430, 0.0
          %v698 = vadd.f32 %v696, %v697
          %v699 = vsel %vm452, %v438, 0.0
          %v700 = vadd.f32 %v698, %v699
          %v701 = vadd.f32 %v444, %v483
          %v702 = vadd.f32 %v445, %v514
          %v703 = vadd.f32 %v446, %v545
          %v704 = vadd.f32 %v447, %v576
          %v705 = vadd.f32 %v448, %v607
          %v706 = vadd.f32 %v449, %v638
          %v707 = vadd.f32 %v450, %v669
          %v708 = vadd.f32 %v451, %v700
          %709 = vst.msk [vmem:[%s149] sm:$0xff] %vm452, %v701
          %710 = vst.msk [vmem:[%s149 + $0x8] sm:$0xff] %vm452, %v702
          %711 = vst.msk [vmem:[%s149 + $0x10] sm:$0xff] %vm452, %v703
          %712 = vst.msk [vmem:[%s149 + $0x18] sm:$0xff] %vm452, %v704
          %713 = vst.msk [vmem:[%s149 + $0x20] sm:$0xff] %vm452, %v705
          %714 = vst.msk [vmem:[%s149 + $0x28] sm:$0xff] %vm452, %v706
          %715 = vst.msk [vmem:[%s149 + $0x30] sm:$0xff] %vm452, %v707
          %716 = vst.msk [vmem:[%s149 + $0x38] sm:$0xff] %vm452, %v708
        $region32: #{tpu_custom_call.1} parent=23 // pred_fallthru
          _
        %p717 = scmp.eq.s32.totalorder %s439, 1
        // Predicated region
        $region33: #{tpu_custom_call.1} parent=23 // pred_check
          %p718 = pneg %p717
        $region34: #{tpu_custom_call.1} parent=23 // pred_check_branch
          %720 = sbr.rel (%p718) target = $region36
        $region35: #{tpu_custom_call.1} parent=23 // pred_region
          %v721 = vlaneseq
          %v722 = vshrl.u32 %v721, 7
          %v723 = vadd.s32 %v722, 8
          %v724 = vadd.s32 %v722, 16
          %v725 = vadd.s32 %v722, 24
          %v726 = vadd.s32 %v722, 32
          %v727 = vadd.s32 %v722, 40
          %v728 = vadd.s32 %v722, 48
          %v729 = vadd.s32 %v722, 56
          %v730 = vadd.s32 %v722, 64
          %v731 = vadd.s32 %v722, 72
          %v732 = vadd.s32 %v722, 80
          %v733 = vadd.s32 %v722, 88
          %v734 = vadd.s32 %v722, 96
          %v735 = vadd.s32 %v722, 104
          %v736 = vadd.s32 %v722, 112
          %v737 = vadd.s32 %v722, 120
          %v738 = vadd.s32 %v722, 128
          %v739 = vadd.s32 %v722, 136
          %v740 = vadd.s32 %v722, 144
          %v741 = vadd.s32 %v722, 152
          %v742 = vadd.s32 %v722, 160
          %v743 = vadd.s32 %v722, 168
          %v744 = vadd.s32 %v722, 176
          %v745 = vadd.s32 %v722, 184
          %v746 = vadd.s32 %v722, 192
          %v747 = vadd.s32 %v722, 200
          %v748 = vadd.s32 %v722, 208
          %v749 = vadd.s32 %v722, 216
          %v750 = vadd.s32 %v722, 224
          %v751 = vadd.s32 %v722, 232
          %v752 = vadd.s32 %v722, 240
          %v753 = vadd.s32 %v722, 248
          %v754 = vadd.s32 %v722, 256
          %v755 = vadd.s32 %v722, 264
          %v756 = vadd.s32 %v722, 272
          %v757 = vadd.s32 %v722, 280
          %v758 = vadd.s32 %v722, 288
          %v759 = vadd.s32 %v722, 296
          %v760 = vadd.s32 %v722, 304
          %v761 = vadd.s32 %v722, 312
          %v762 = vadd.s32 %v722, 320
          %v763 = vadd.s32 %v722, 328
          %v764 = vadd.s32 %v722, 336
          %v765 = vadd.s32 %v722, 344
          %v766 = vadd.s32 %v722, 352
          %v767 = vadd.s32 %v722, 360
          %v768 = vadd.s32 %v722, 368
          %v769 = vadd.s32 %v722, 376
          %v770 = vadd.s32 %v722, 384
          %v771 = vadd.s32 %v722, 392
          %v772 = vadd.s32 %v722, 400
          %v773 = vadd.s32 %v722, 408
          %v774 = vadd.s32 %v722, 416
          %v775 = vadd.s32 %v722, 424
          %v776 = vadd.s32 %v722, 432
          %v777 = vadd.s32 %v722, 440
          %v778 = vadd.s32 %v722, 448
          %v779 = vadd.s32 %v722, 456
          %v780 = vadd.s32 %v722, 464
          %v781 = vadd.s32 %v722, 472
          %v782 = vadd.s32 %v722, 480
          %v783 = vadd.s32 %v722, 488
          %v784 = vadd.s32 %v722, 496
          %v785 = vadd.s32 %v722, 504
          %v786 = vadd.s32 %v722, 512
          %v787 = vadd.s32 %v722, 520
          %v788 = vadd.s32 %v722, 528
          %v789 = vadd.s32 %v722, 536
          %v790 = vadd.s32 %v722, 544
          %v791 = vadd.s32 %v722, 552
          %v792 = vadd.s32 %v722, 560
          %v793 = vadd.s32 %v722, 568
          %v794 = vadd.s32 %v722, 576
          %v795 = vadd.s32 %v722, 584
          %v796 = vadd.s32 %v722, 592
          %v797 = vadd.s32 %v722, 600
          %v798 = vadd.s32 %v722, 608
          %v799 = vadd.s32 %v722, 616
          %v800 = vadd.s32 %v722, 624
          %v801 = vadd.s32 %v722, 632
          %v802 = vadd.s32 %v722, 640
          %v803 = vadd.s32 %v722, 648
          %v804 = vadd.s32 %v722, 656
          %v805 = vadd.s32 %v722, 664
          %v806 = vadd.s32 %v722, 672
          %v807 = vadd.s32 %v722, 680
          %v808 = vadd.s32 %v722, 688
          %v809 = vadd.s32 %v722, 696
          %v810 = vadd.s32 %v722, 704
          %v811 = vadd.s32 %v722, 712
          %v812 = vadd.s32 %v722, 720
          %v813 = vadd.s32 %v722, 728
          %v814 = vadd.s32 %v722, 736
          %v815 = vadd.s32 %v722, 744
          %v816 = vadd.s32 %v722, 752
          %v817 = vadd.s32 %v722, 760
          %v818 = vadd.s32 %v722, 768
          %v819 = vadd.s32 %v722, 776
          %v820 = vadd.s32 %v722, 784
          %v821 = vadd.s32 %v722, 792
          %v822 = vadd.s32 %v722, 800
          %v823 = vadd.s32 %v722, 808
          %v824 = vadd.s32 %v722, 816
          %v825 = vadd.s32 %v722, 824
          %v826 = vadd.s32 %v722, 832
          %v827 = vadd.s32 %v722, 840
          %v828 = vadd.s32 %v722, 848
          %v829 = vadd.s32 %v722, 856
          %v830 = vadd.s32 %v722, 864
          %v831 = vadd.s32 %v722, 872
          %v832 = vadd.s32 %v722, 880
          %v833 = vadd.s32 %v722, 888
          %v834 = vadd.s32 %v722, 896
          %v835 = vadd.s32 %v722, 904
          %v836 = vadd.s32 %v722, 912
          %v837 = vadd.s32 %v722, 920
          %v838 = vadd.s32 %v722, 928
          %v839 = vadd.s32 %v722, 936
          %v840 = vadd.s32 %v722, 944
          %v841 = vadd.s32 %v722, 952
          %v842 = vadd.s32 %v722, 960
          %v843 = vadd.s32 %v722, 968
          %v844 = vadd.s32 %v722, 976
          %v845 = vadd.s32 %v722, 984
          %v846 = vadd.s32 %v722, 992
          %v847 = vadd.s32 %v722, 1000
          %v848 = vadd.s32 %v722, 1008
          %v849 = vadd.s32 %v722, 1016
          %vm850 = vcmp.lt.s32.totalorder %v722, 13
          %vm851 = vcmp.lt.s32.totalorder %v723, 13
          %vm852 = vcmp.lt.s32.totalorder %v724, 13
          %vm853 = vcmp.lt.s32.totalorder %v725, 13
          %vm854 = vcmp.lt.s32.totalorder %v726, 13
          %vm855 = vcmp.lt.s32.totalorder %v727, 13
          %vm856 = vcmp.lt.s32.totalorder %v728, 13
          %vm857 = vcmp.lt.s32.totalorder %v729, 13
          %vm858 = vcmp.lt.s32.totalorder %v730, 13
          %vm859 = vcmp.lt.s32.totalorder %v731, 13
          %vm860 = vcmp.lt.s32.totalorder %v732, 13
          %vm861 = vcmp.lt.s32.totalorder %v733, 13
          %vm862 = vcmp.lt.s32.totalorder %v734, 13
          %vm863 = vcmp.lt.s32.totalorder %v735, 13
          %vm864 = vcmp.lt.s32.totalorder %v736, 13
          %vm865 = vcmp.lt.s32.totalorder %v737, 13
          %vm866 = vcmp.lt.s32.totalorder %v738, 13
          %vm867 = vcmp.lt.s32.totalorder %v739, 13
          %vm868 = vcmp.lt.s32.totalorder %v740, 13
          %vm869 = vcmp.lt.s32.totalorder %v741, 13
          %vm870 = vcmp.lt.s32.totalorder %v742, 13
          %vm871 = vcmp.lt.s32.totalorder %v743, 13
          %vm872 = vcmp.lt.s32.totalorder %v744, 13
          %vm873 = vcmp.lt.s32.totalorder %v745, 13
          %vm874 = vcmp.lt.s32.totalorder %v746, 13
          %vm875 = vcmp.lt.s32.totalorder %v747, 13
          %vm876 = vcmp.lt.s32.totalorder %v748, 13
          %vm877 = vcmp.lt.s32.totalorder %v749, 13
          %vm878 = vcmp.lt.s32.totalorder %v750, 13
          %vm879 = vcmp.lt.s32.totalorder %v751, 13
          %vm880 = vcmp.lt.s32.totalorder %v752, 13
          %vm881 = vcmp.lt.s32.totalorder %v753, 13
          %vm882 = vcmp.lt.s32.totalorder %v754, 13
          %vm883 = vcmp.lt.s32.totalorder %v755, 13
          %vm884 = vcmp.lt.s32.totalorder %v756, 13
          %vm885 = vcmp.lt.s32.totalorder %v757, 13
          %vm886 = vcmp.lt.s32.totalorder %v758, 13
          %vm887 = vcmp.lt.s32.totalorder %v759, 13
          %vm888 = vcmp.lt.s32.totalorder %v760, 13
          %vm889 = vcmp.lt.s32.totalorder %v761, 13
          %vm890 = vcmp.lt.s32.totalorder %v762, 13
          %vm891 = vcmp.lt.s32.totalorder %v763, 13
          %vm892 = vcmp.lt.s32.totalorder %v764, 13
          %vm893 = vcmp.lt.s32.totalorder %v765, 13
          %vm894 = vcmp.lt.s32.totalorder %v766, 13
          %vm895 = vcmp.lt.s32.totalorder %v767, 13
          %vm896 = vcmp.lt.s32.totalorder %v768, 13
          %vm897 = vcmp.lt.s32.totalorder %v769, 13
          %vm898 = vcmp.lt.s32.totalorder %v770, 13
          %vm899 = vcmp.lt.s32.totalorder %v771, 13
          %vm900 = vcmp.lt.s32.totalorder %v772, 13
          %vm901 = vcmp.lt.s32.totalorder %v773, 13
          %vm902 = vcmp.lt.s32.totalorder %v774, 13
          %vm903 = vcmp.lt.s32.totalorder %v775, 13
          %vm904 = vcmp.lt.s32.totalorder %v776, 13
          %vm905 = vcmp.lt.s32.totalorder %v777, 13
          %vm906 = vcmp.lt.s32.totalorder %v778, 13
          %vm907 = vcmp.lt.s32.totalorder %v779, 13
          %vm908 = vcmp.lt.s32.totalorder %v780, 13
          %vm909 = vcmp.lt.s32.totalorder %v781, 13
          %vm910 = vcmp.lt.s32.totalorder %v782, 13
          %vm911 = vcmp.lt.s32.totalorder %v783, 13
          %vm912 = vcmp.lt.s32.totalorder %v784, 13
          %vm913 = vcmp.lt.s32.totalorder %v785, 13
          %vm914 = vcmp.lt.s32.totalorder %v786, 13
          %vm915 = vcmp.lt.s32.totalorder %v787, 13
          %vm916 = vcmp.lt.s32.totalorder %v788, 13
          %vm917 = vcmp.lt.s32.totalorder %v789, 13
          %vm918 = vcmp.lt.s32.totalorder %v790, 13
          %vm919 = vcmp.lt.s32.totalorder %v791, 13
          %vm920 = vcmp.lt.s32.totalorder %v792, 13
          %vm921 = vcmp.lt.s32.totalorder %v793, 13
          %vm922 = vcmp.lt.s32.totalorder %v794, 13
          %vm923 = vcmp.lt.s32.totalorder %v795, 13
          %vm924 = vcmp.lt.s32.totalorder %v796, 13
          %vm925 = vcmp.lt.s32.totalorder %v797, 13
          %vm926 = vcmp.lt.s32.totalorder %v798, 13
          %vm927 = vcmp.lt.s32.totalorder %v799, 13
          %vm928 = vcmp.lt.s32.totalorder %v800, 13
          %vm929 = vcmp.lt.s32.totalorder %v801, 13
          %vm930 = vcmp.lt.s32.totalorder %v802, 13
          %vm931 = vcmp.lt.s32.totalorder %v803, 13
          %vm932 = vcmp.lt.s32.totalorder %v804, 13
          %vm933 = vcmp.lt.s32.totalorder %v805, 13
          %vm934 = vcmp.lt.s32.totalorder %v806, 13
          %vm935 = vcmp.lt.s32.totalorder %v807, 13
          %vm936 = vcmp.lt.s32.totalorder %v808, 13
          %vm937 = vcmp.lt.s32.totalorder %v809, 13
          %vm938 = vcmp.lt.s32.totalorder %v810, 13
          %vm939 = vcmp.lt.s32.totalorder %v811, 13
          %vm940 = vcmp.lt.s32.totalorder %v812, 13
          %vm941 = vcmp.lt.s32.totalorder %v813, 13
          %vm942 = vcmp.lt.s32.totalorder %v814, 13
          %vm943 = vcmp.lt.s32.totalorder %v815, 13
          %vm944 = vcmp.lt.s32.totalorder %v816, 13
          %vm945 = vcmp.lt.s32.totalorder %v817, 13
          %vm946 = vcmp.lt.s32.totalorder %v818, 13
          %vm947 = vcmp.lt.s32.totalorder %v819, 13
          %vm948 = vcmp.lt.s32.totalorder %v820, 13
          %vm949 = vcmp.lt.s32.totalorder %v821, 13
          %vm950 = vcmp.lt.s32.totalorder %v822, 13
          %vm951 = vcmp.lt.s32.totalorder %v823, 13
          %vm952 = vcmp.lt.s32.totalorder %v824, 13
          %vm953 = vcmp.lt.s32.totalorder %v825, 13
          %vm954 = vcmp.lt.s32.totalorder %v826, 13
          %vm955 = vcmp.lt.s32.totalorder %v827, 13
          %vm956 = vcmp.lt.s32.totalorder %v828, 13
          %vm957 = vcmp.lt.s32.totalorder %v829, 13
          %vm958 = vcmp.lt.s32.totalorder %v830, 13
          %vm959 = vcmp.lt.s32.totalorder %v831, 13
          %vm960 = vcmp.lt.s32.totalorder %v832, 13
          %vm961 = vcmp.lt.s32.totalorder %v833, 13
          %vm962 = vcmp.lt.s32.totalorder %v834, 13
          %vm963 = vcmp.lt.s32.totalorder %v835, 13
          %vm964 = vcmp.lt.s32.totalorder %v836, 13
          %vm965 = vcmp.lt.s32.totalorder %v837, 13
          %vm966 = vcmp.lt.s32.totalorder %v838, 13
          %vm967 = vcmp.lt.s32.totalorder %v839, 13
          %vm968 = vcmp.lt.s32.totalorder %v840, 13
          %vm969 = vcmp.lt.s32.totalorder %v841, 13
          %vm970 = vcmp.lt.s32.totalorder %v842, 13
          %vm971 = vcmp.lt.s32.totalorder %v843, 13
          %vm972 = vcmp.lt.s32.totalorder %v844, 13
          %vm973 = vcmp.lt.s32.totalorder %v845, 13
          %vm974 = vcmp.lt.s32.totalorder %v846, 13
          %vm975 = vcmp.lt.s32.totalorder %v847, 13
          %vm976 = vcmp.lt.s32.totalorder %v848, 13
          %vm977 = vcmp.lt.s32.totalorder %v849, 13
          %v978 = vsel %vm850, %v311, 0.0
          %v979 = vsel %vm851, %v312, 0.0
          %v980 = vsel %vm852, %v313, 0.0
          %v981 = vsel %vm853, %v314, 0.0
          %v982 = vsel %vm854, %v315, 0.0
          %v983 = vsel %vm855, %v316, 0.0
          %v984 = vsel %vm856, %v317, 0.0
          %v985 = vsel %vm857, %v318, 0.0
          %v986 = vsel %vm858, %v319, 0.0
          %v987 = vsel %vm859, %v320, 0.0
          %v988 = vsel %vm860, %v321, 0.0
          %v989 = vsel %vm861, %v322, 0.0
          %v990 = vsel %vm862, %v323, 0.0
          %v991 = vsel %vm863, %v324, 0.0
          %v992 = vsel %vm864, %v325, 0.0
          %v993 = vsel %vm865, %v326, 0.0
          %v994 = vsel %vm866, %v327, 0.0
          %v995 = vsel %vm867, %v328, 0.0
          %v996 = vsel %vm868, %v329, 0.0
          %v997 = vsel %vm869, %v330, 0.0
          %v998 = vsel %vm870, %v331, 0.0
          %v999 = vsel %vm871, %v332, 0.0
          %v1000 = vsel %vm872, %v333, 0.0
          %v1001 = vsel %vm873, %v334, 0.0
          %v1002 = vsel %vm874, %v335, 0.0
          %v1003 = vsel %vm875, %v336, 0.0
          %v1004 = vsel %vm876, %v337, 0.0
          %v1005 = vsel %vm877, %v338, 0.0
          %v1006 = vsel %vm878, %v339, 0.0
          %v1007 = vsel %vm879, %v340, 0.0
          %v1008 = vsel %vm880, %v341, 0.0
          %v1009 = vsel %vm881, %v342, 0.0
          %v1010 = vsel %vm882, %v343, 0.0
          %v1011 = vsel %vm883, %v344, 0.0
          %v1012 = vsel %vm884, %v345, 0.0
          %v1013 = vsel %vm885, %v346, 0.0
          %v1014 = vsel %vm886, %v347, 0.0
          %v1015 = vsel %vm887, %v348, 0.0
          %v1016 = vsel %vm888, %v349, 0.0
          %v1017 = vsel %vm889, %v350, 0.0
          %v1018 = vsel %vm890, %v351, 0.0
          %v1019 = vsel %vm891, %v352, 0.0
          %v1020 = vsel %vm892, %v353, 0.0
          %v1021 = vsel %vm893, %v354, 0.0
          %v1022 = vsel %vm894, %v355, 0.0
          %v1023 = vsel %vm895, %v356, 0.0
          %v1024 = vsel %vm896, %v357, 0.0
          %v1025 = vsel %vm897, %v358, 0.0
          %v1026 = vsel %vm898, %v359, 0.0
          %v1027 = vsel %vm899, %v360, 0.0
          %v1028 = vsel %vm900, %v361, 0.0
          %v1029 = vsel %vm901, %v362, 0.0
          %v1030 = vsel %vm902, %v363, 0.0
          %v1031 = vsel %vm903, %v364, 0.0
          %v1032 = vsel %vm904, %v365, 0.0
          %v1033 = vsel %vm905, %v366, 0.0
          %v1034 = vsel %vm906, %v367, 0.0
          %v1035 = vsel %vm907, %v368, 0.0
          %v1036 = vsel %vm908, %v369, 0.0
          %v1037 = vsel %vm909, %v370, 0.0
          %v1038 = vsel %vm910, %v371, 0.0
          %v1039 = vsel %vm911, %v372, 0.0
          %v1040 = vsel %vm912, %v373, 0.0
          %v1041 = vsel %vm913, %v374, 0.0
          %v1042 = vsel %vm914, %v375, 0.0
          %v1043 = vsel %vm915, %v376, 0.0
          %v1044 = vsel %vm916, %v377, 0.0
          %v1045 = vsel %vm917, %v378, 0.0
          %v1046 = vsel %vm918, %v379, 0.0
          %v1047 = vsel %vm919, %v380, 0.0
          %v1048 = vsel %vm920, %v381, 0.0
          %v1049 = vsel %vm921, %v382, 0.0
          %v1050 = vsel %vm922, %v383, 0.0
          %v1051 = vsel %vm923, %v384, 0.0
          %v1052 = vsel %vm924, %v385, 0.0
          %v1053 = vsel %vm925, %v386, 0.0
          %v1054 = vsel %vm926, %v387, 0.0
          %v1055 = vsel %vm927, %v388, 0.0
          %v1056 = vsel %vm928, %v389, 0.0
          %v1057 = vsel %vm929, %v390, 0.0
          %v1058 = vsel %vm930, %v391, 0.0
          %v1059 = vsel %vm931, %v392, 0.0
          %v1060 = vsel %vm932, %v393, 0.0
          %v1061 = vsel %vm933, %v394, 0.0
          %v1062 = vsel %vm934, %v395, 0.0
          %v1063 = vsel %vm935, %v396, 0.0
          %v1064 = vsel %vm936, %v397, 0.0
          %v1065 = vsel %vm937, %v398, 0.0
          %v1066 = vsel %vm938, %v399, 0.0
          %v1067 = vsel %vm939, %v400, 0.0
          %v1068 = vsel %vm940, %v401, 0.0
          %v1069 = vsel %vm941, %v402, 0.0
          %v1070 = vsel %vm942, %v403, 0.0
          %v1071 = vsel %vm943, %v404, 0.0
          %v1072 = vsel %vm944, %v405, 0.0
          %v1073 = vsel %vm945, %v406, 0.0
          %v1074 = vsel %vm946, %v407, 0.0
          %v1075 = vsel %vm947, %v408, 0.0
          %v1076 = vsel %vm948, %v409, 0.0
          %v1077 = vsel %vm949, %v410, 0.0
          %v1078 = vsel %vm950, %v411, 0.0
          %v1079 = vsel %vm951, %v412, 0.0
          %v1080 = vsel %vm952, %v413, 0.0
          %v1081 = vsel %vm953, %v414, 0.0
          %v1082 = vsel %vm954, %v415, 0.0
          %v1083 = vsel %vm955, %v416, 0.0
          %v1084 = vsel %vm956, %v417, 0.0
          %v1085 = vsel %vm957, %v418, 0.0
          %v1086 = vsel %vm958, %v419, 0.0
          %v1087 = vsel %vm959, %v420, 0.0
          %v1088 = vsel %vm960, %v421, 0.0
          %v1089 = vsel %vm961, %v422, 0.0
          %v1090 = vsel %vm962, %v423, 0.0
          %v1091 = vsel %vm963, %v424, 0.0
          %v1092 = vsel %vm964, %v425, 0.0
          %v1093 = vsel %vm965, %v426, 0.0
          %v1094 = vsel %vm966, %v427, 0.0
          %v1095 = vsel %vm967, %v428, 0.0
          %v1096 = vsel %vm968, %v429, 0.0
          %v1097 = vsel %vm969, %v430, 0.0
          %v1098 = vsel %vm970, %v431, 0.0
          %v1099 = vsel %vm971, %v432, 0.0
          %v1100 = vsel %vm972, %v433, 0.0
          %v1101 = vsel %vm973, %v434, 0.0
          %v1102 = vsel %vm974, %v435, 0.0
          %v1103 = vsel %vm975, %v436, 0.0
          %v1104 = vsel %vm976, %v437, 0.0
          %v1105 = vsel %vm977, %v438, 0.0
          %v1106 = vld [vmem:[%s149] sm:$0xff]
          %v1107 = vld [vmem:[%s149 + $0x8] sm:$0xff]
          %v1108 = vld [vmem:[%s149 + $0x10] sm:$0xff]
          %v1109 = vld [vmem:[%s149 + $0x18] sm:$0xff]
          %v1110 = vld [vmem:[%s149 + $0x20] sm:$0xff]
          %v1111 = vld [vmem:[%s149 + $0x28] sm:$0xff]
          %v1112 = vld [vmem:[%s149 + $0x30] sm:$0xff]
          %v1113 = vld [vmem:[%s149 + $0x38] sm:$0xff]
          %vm1114 = vcmask 785408
          %v1115 = vsel %vm1114, %v978, 0.0
          %v1116 = vsel %vm1114, %v986, 0.0
          %v1117 = vadd.f32 %v1115, %v1116
          %v1118 = vsel %vm1114, %v994, 0.0
          %v1119 = vadd.f32 %v1117, %v1118
          %v1120 = vsel %vm1114, %v1002, 0.0
          %v1121 = vadd.f32 %v1119, %v1120
          %v1122 = vsel %vm1114, %v1010, 0.0
          %v1123 = vadd.f32 %v1121, %v1122
          %v1124 = vsel %vm1114, %v1018, 0.0
          %v1125 = vadd.f32 %v1123, %v1124
          %v1126 = vsel %vm1114, %v1026, 0.0
          %v1127 = vadd.f32 %v1125, %v1126
          %v1128 = vsel %vm1114, %v1034, 0.0
          %v1129 = vadd.f32 %v1127, %v1128
          %v1130 = vsel %vm1114, %v1042, 0.0
          %v1131 = vadd.f32 %v1129, %v1130
          %v1132 = vsel %vm1114, %v1050, 0.0
          %v1133 = vadd.f32 %v1131, %v1132
          %v1134 = vsel %vm1114, %v1058, 0.0
          %v1135 = vadd.f32 %v1133, %v1134
          %v1136 = vsel %vm1114, %v1066, 0.0
          %v1137 = vadd.f32 %v1135, %v1136
          %v1138 = vsel %vm1114, %v1074, 0.0
          %v1139 = vadd.f32 %v1137, %v1138
          %v1140 = vsel %vm1114, %v1082, 0.0
          %v1141 = vadd.f32 %v1139, %v1140
          %v1142 = vsel %vm1114, %v1090, 0.0
          %v1143 = vadd.f32 %v1141, %v1142
          %v1144 = vsel %vm1114, %v1098, 0.0
          %v1145 = vadd.f32 %v1143, %v1144
          %v1146 = vsel %vm1114, %v979, 0.0
          %v1147 = vsel %vm1114, %v987, 0.0
          %v1148 = vadd.f32 %v1146, %v1147
          %v1149 = vsel %vm1114, %v995, 0.0
          %v1150 = vadd.f32 %v1148, %v1149
          %v1151 = vsel %vm1114, %v1003, 0.0
          %v1152 = vadd.f32 %v1150, %v1151
          %v1153 = vsel %vm1114, %v1011, 0.0
          %v1154 = vadd.f32 %v1152, %v1153
          %v1155 = vsel %vm1114, %v1019, 0.0
          %v1156 = vadd.f32 %v1154, %v1155
          %v1157 = vsel %vm1114, %v1027, 0.0
          %v1158 = vadd.f32 %v1156, %v1157
          %v1159 = vsel %vm1114, %v1035, 0.0
          %v1160 = vadd.f32 %v1158, %v1159
          %v1161 = vsel %vm1114, %v1043, 0.0
          %v1162 = vadd.f32 %v1160, %v1161
          %v1163 = vsel %vm1114, %v1051, 0.0
          %v1164 = vadd.f32 %v1162, %v1163
          %v1165 = vsel %vm1114, %v1059, 0.0
          %v1166 = vadd.f32 %v1164, %v1165
          %v1167 = vsel %vm1114, %v1067, 0.0
          %v1168 = vadd.f32 %v1166, %v1167
          %v1169 = vsel %vm1114, %v1075, 0.0
          %v1170 = vadd.f32 %v1168, %v1169
          %v1171 = vsel %vm1114, %v1083, 0.0
          %v1172 = vadd.f32 %v1170, %v1171
          %v1173 = vsel %vm1114, %v1091, 0.0
          %v1174 = vadd.f32 %v1172, %v1173
          %v1175 = vsel %vm1114, %v1099, 0.0
          %v1176 = vadd.f32 %v1174, %v1175
          %v1177 = vsel %vm1114, %v980, 0.0
          %v1178 = vsel %vm1114, %v988, 0.0
          %v1179 = vadd.f32 %v1177, %v1178
          %v1180 = vsel %vm1114, %v996, 0.0
          %v1181 = vadd.f32 %v1179, %v1180
          %v1182 = vsel %vm1114, %v1004, 0.0
          %v1183 = vadd.f32 %v1181, %v1182
          %v1184 = vsel %vm1114, %v1012, 0.0
          %v1185 = vadd.f32 %v1183, %v1184
          %v1186 = vsel %vm1114, %v1020, 0.0
          %v1187 = vadd.f32 %v1185, %v1186
          %v1188 = vsel %vm1114, %v1028, 0.0
          %v1189 = vadd.f32 %v1187, %v1188
          %v1190 = vsel %vm1114, %v1036, 0.0
          %v1191 = vadd.f32 %v1189, %v1190
          %v1192 = vsel %vm1114, %v1044, 0.0
          %v1193 = vadd.f32 %v1191, %v1192
          %v1194 = vsel %vm1114, %v1052, 0.0
          %v1195 = vadd.f32 %v1193, %v1194
          %v1196 = vsel %vm1114, %v1060, 0.0
          %v1197 = vadd.f32 %v1195, %v1196
          %v1198 = vsel %vm1114, %v1068, 0.0
          %v1199 = vadd.f32 %v1197, %v1198
          %v1200 = vsel %vm1114, %v1076, 0.0
          %v1201 = vadd.f32 %v1199, %v1200
          %v1202 = vsel %vm1114, %v1084, 0.0
          %v1203 = vadd.f32 %v1201, %v1202
          %v1204 = vsel %vm1114, %v1092, 0.0
          %v1205 = vadd.f32 %v1203, %v1204
          %v1206 = vsel %vm1114, %v1100, 0.0
          %v1207 = vadd.f32 %v1205, %v1206
          %v1208 = vsel %vm1114, %v981, 0.0
          %v1209 = vsel %vm1114, %v989, 0.0
          %v1210 = vadd.f32 %v1208, %v1209
          %v1211 = vsel %vm1114, %v997, 0.0
          %v1212 = vadd.f32 %v1210, %v1211
          %v1213 = vsel %vm1114, %v1005, 0.0
          %v1214 = vadd.f32 %v1212, %v1213
          %v1215 = vsel %vm1114, %v1013, 0.0
          %v1216 = vadd.f32 %v1214, %v1215
          %v1217 = vsel %vm1114, %v1021, 0.0
          %v1218 = vadd.f32 %v1216, %v1217
          %v1219 = vsel %vm1114, %v1029, 0.0
          %v1220 = vadd.f32 %v1218, %v1219
          %v1221 = vsel %vm1114, %v1037, 0.0
          %v1222 = vadd.f32 %v1220, %v1221
          %v1223 = vsel %vm1114, %v1045, 0.0
          %v1224 = vadd.f32 %v1222, %v1223
          %v1225 = vsel %vm1114, %v1053, 0.0
          %v1226 = vadd.f32 %v1224, %v1225
          %v1227 = vsel %vm1114, %v1061, 0.0
          %v1228 = vadd.f32 %v1226, %v1227
          %v1229 = vsel %vm1114, %v1069, 0.0
          %v1230 = vadd.f32 %v1228, %v1229
          %v1231 = vsel %vm1114, %v1077, 0.0
          %v1232 = vadd.f32 %v1230, %v1231
          %v1233 = vsel %vm1114, %v1085, 0.0
          %v1234 = vadd.f32 %v1232, %v1233
          %v1235 = vsel %vm1114, %v1093, 0.0
          %v1236 = vadd.f32 %v1234, %v1235
          %v1237 = vsel %vm1114, %v1101, 0.0
          %v1238 = vadd.f32 %v1236, %v1237
          %v1239 = vsel %vm1114, %v982, 0.0
          %v1240 = vsel %vm1114, %v990, 0.0
          %v1241 = vadd.f32 %v1239, %v1240
          %v1242 = vsel %vm1114, %v998, 0.0
          %v1243 = vadd.f32 %v1241, %v1242
          %v1244 = vsel %vm1114, %v1006, 0.0
          %v1245 = vadd.f32 %v1243, %v1244
          %v1246 = vsel %vm1114, %v1014, 0.0
          %v1247 = vadd.f32 %v1245, %v1246
          %v1248 = vsel %vm1114, %v1022, 0.0
          %v1249 = vadd.f32 %v1247, %v1248
          %v1250 = vsel %vm1114, %v1030, 0.0
          %v1251 = vadd.f32 %v1249, %v1250
          %v1252 = vsel %vm1114, %v1038, 0.0
          %v1253 = vadd.f32 %v1251, %v1252
          %v1254 = vsel %vm1114, %v1046, 0.0
          %v1255 = vadd.f32 %v1253, %v1254
          %v1256 = vsel %vm1114, %v1054, 0.0
          %v1257 = vadd.f32 %v1255, %v1256
          %v1258 = vsel %vm1114, %v1062, 0.0
          %v1259 = vadd.f32 %v1257, %v1258
          %v1260 = vsel %vm1114, %v1070, 0.0
          %v1261 = vadd.f32 %v1259, %v1260
          %v1262 = vsel %vm1114, %v1078, 0.0
          %v1263 = vadd.f32 %v1261, %v1262
          %v1264 = vsel %vm1114, %v1086, 0.0
          %v1265 = vadd.f32 %v1263, %v1264
          %v1266 = vsel %vm1114, %v1094, 0.0
          %v1267 = vadd.f32 %v1265, %v1266
          %v1268 = vsel %vm1114, %v1102, 0.0
          %v1269 = vadd.f32 %v1267, %v1268
          %v1270 = vsel %vm1114, %v983, 0.0
          %v1271 = vsel %vm1114, %v991, 0.0
          %v1272 = vadd.f32 %v1270, %v1271
          %v1273 = vsel %vm1114, %v999, 0.0
          %v1274 = vadd.f32 %v1272, %v1273
          %v1275 = vsel %vm1114, %v1007, 0.0
          %v1276 = vadd.f32 %v1274, %v1275
          %v1277 = vsel %vm1114, %v1015, 0.0
          %v1278 = vadd.f32 %v1276, %v1277
          %v1279 = vsel %vm1114, %v1023, 0.0
          %v1280 = vadd.f32 %v1278, %v1279
          %v1281 = vsel %vm1114, %v1031, 0.0
          %v1282 = vadd.f32 %v1280, %v1281
          %v1283 = vsel %vm1114, %v1039, 0.0
          %v1284 = vadd.f32 %v1282, %v1283
          %v1285 = vsel %vm1114, %v1047, 0.0
          %v1286 = vadd.f32 %v1284, %v1285
          %v1287 = vsel %vm1114, %v1055, 0.0
          %v1288 = vadd.f32 %v1286, %v1287
          %v1289 = vsel %vm1114, %v1063, 0.0
          %v1290 = vadd.f32 %v1288, %v1289
          %v1291 = vsel %vm1114, %v1071, 0.0
          %v1292 = vadd.f32 %v1290, %v1291
          %v1293 = vsel %vm1114, %v1079, 0.0
          %v1294 = vadd.f32 %v1292, %v1293
          %v1295 = vsel %vm1114, %v1087, 0.0
          %v1296 = vadd.f32 %v1294, %v1295
          %v1297 = vsel %vm1114, %v1095, 0.0
          %v1298 = vadd.f32 %v1296, %v1297
          %v1299 = vsel %vm1114, %v1103, 0.0
          %v1300 = vadd.f32 %v1298, %v1299
          %v1301 = vsel %vm1114, %v984, 0.0
          %v1302 = vsel %vm1114, %v992, 0.0
          %v1303 = vadd.f32 %v1301, %v1302
          %v1304 = vsel %vm1114, %v1000, 0.0
          %v1305 = vadd.f32 %v1303, %v1304
          %v1306 = vsel %vm1114, %v1008, 0.0
          %v1307 = vadd.f32 %v1305, %v1306
          %v1308 = vsel %vm1114, %v1016, 0.0
          %v1309 = vadd.f32 %v1307, %v1308
          %v1310 = vsel %vm1114, %v1024, 0.0
          %v1311 = vadd.f32 %v1309, %v1310
          %v1312 = vsel %vm1114, %v1032, 0.0
          %v1313 = vadd.f32 %v1311, %v1312
          %v1314 = vsel %vm1114, %v1040, 0.0
          %v1315 = vadd.f32 %v1313, %v1314
          %v1316 = vsel %vm1114, %v1048, 0.0
          %v1317 = vadd.f32 %v1315, %v1316
          %v1318 = vsel %vm1114, %v1056, 0.0
          %v1319 = vadd.f32 %v1317, %v1318
          %v1320 = vsel %vm1114, %v1064, 0.0
          %v1321 = vadd.f32 %v1319, %v1320
          %v1322 = vsel %vm1114, %v1072, 0.0
          %v1323 = vadd.f32 %v1321, %v1322
          %v1324 = vsel %vm1114, %v1080, 0.0
          %v1325 = vadd.f32 %v1323, %v1324
          %v1326 = vsel %vm1114, %v1088, 0.0
          %v1327 = vadd.f32 %v1325, %v1326
          %v1328 = vsel %vm1114, %v1096, 0.0
          %v1329 = vadd.f32 %v1327, %v1328
          %v1330 = vsel %vm1114, %v1104, 0.0
          %v1331 = vadd.f32 %v1329, %v1330
          %v1332 = vsel %vm1114, %v985, 0.0
          %v1333 = vsel %vm1114, %v993, 0.0
          %v1334 = vadd.f32 %v1332, %v1333
          %v1335 = vsel %vm1114, %v1001, 0.0
          %v1336 = vadd.f32 %v1334, %v1335
          %v1337 = vsel %vm1114, %v1009, 0.0
          %v1338 = vadd.f32 %v1336, %v1337
          %v1339 = vsel %vm1114, %v1017, 0.0
          %v1340 = vadd.f32 %v1338, %v1339
          %v1341 = vsel %vm1114, %v1025, 0.0
          %v1342 = vadd.f32 %v1340, %v1341
          %v1343 = vsel %vm1114, %v1033, 0.0
          %v1344 = vadd.f32 %v1342, %v1343
          %v1345 = vsel %vm1114, %v1041, 0.0
          %v1346 = vadd.f32 %v1344, %v1345
          %v1347 = vsel %vm1114, %v1049, 0.0
          %v1348 = vadd.f32 %v1346, %v1347
          %v1349 = vsel %vm1114, %v1057, 0.0
          %v1350 = vadd.f32 %v1348, %v1349
          %v1351 = vsel %vm1114, %v1065, 0.0
          %v1352 = vadd.f32 %v1350, %v1351
          %v1353 = vsel %vm1114, %v1073, 0.0
          %v1354 = vadd.f32 %v1352, %v1353
          %v1355 = vsel %vm1114, %v1081, 0.0
          %v1356 = vadd.f32 %v1354, %v1355
          %v1357 = vsel %vm1114, %v1089, 0.0
          %v1358 = vadd.f32 %v1356, %v1357
          %v1359 = vsel %vm1114, %v1097, 0.0
          %v1360 = vadd.f32 %v1358, %v1359
          %v1361 = vsel %vm1114, %v1105, 0.0
          %v1362 = vadd.f32 %v1360, %v1361
          %v1363 = vadd.f32 %v1106, %v1145
          %v1364 = vadd.f32 %v1107, %v1176
          %v1365 = vadd.f32 %v1108, %v1207
          %v1366 = vadd.f32 %v1109, %v1238
          %v1367 = vadd.f32 %v1110, %v1269
          %v1368 = vadd.f32 %v1111, %v1300
          %v1369 = vadd.f32 %v1112, %v1331
          %v1370 = vadd.f32 %v1113, %v1362
          %1371 = vst.msk [vmem:[%s149] sm:$0xff] %vm1114, %v1363
          %1372 = vst.msk [vmem:[%s149 + $0x8] sm:$0xff] %vm1114, %v1364
          %1373 = vst.msk [vmem:[%s149 + $0x10] sm:$0xff] %vm1114, %v1365
          %1374 = vst.msk [vmem:[%s149 + $0x18] sm:$0xff] %vm1114, %v1366
          %1375 = vst.msk [vmem:[%s149 + $0x20] sm:$0xff] %vm1114, %v1367
          %1376 = vst.msk [vmem:[%s149 + $0x28] sm:$0xff] %vm1114, %v1368
          %1377 = vst.msk [vmem:[%s149 + $0x30] sm:$0xff] %vm1114, %v1369
          %1378 = vst.msk [vmem:[%s149 + $0x38] sm:$0xff] %vm1114, %v1370
        $region36: #{tpu_custom_call.1} parent=23 // pred_fallthru
          _
        %s1379 = sand.u32 %s67, 1
        %s1380 = scalar_lea.sflag [#allocation3], %s1379
        %s1381 = sand.u32 %s67, 1
        %s1382 = smul.addr %s1381, 64
        %s1383 = scalar_lea.vmem [#allocation2], %s1382
        // Predicated region
        $region37: #{tpu_custom_call.1} parent=23 // pred_check
          %p1384 = pneg %p77
        $region38: #{tpu_custom_call.1} parent=23 // pred_check_branch
          %1386 = sbr.rel (%p1384) target = $region40
        $region39: #{tpu_custom_call.1} parent=23 // pred_region
          %s1388 = ssub.s32 1024, 1024
          %1389 = vsyncadd %s1380, %s1388
          %s1390 = smul.addr %s19, 8
          %s1391 = smul.addr %s1390, 128
          %s1392 = scalar_lea.hbm %s1, %s1391
          %s1393 = sshll.u32 %s1383, 4
          %s1394 = int_to_ptr.vmem [resolvable:$true] %s1393
          %1399 = dma.vmem_to_hbm [thread:$0]  %s1394, 1024, %s1392, %s1380, 128, 128, 8
        $region40: #{tpu_custom_call.1} parent=23 // pred_fallthru
          _
      $region24: #{tpu_custom_call.1} parent=5 // pred_fallthru
        _
      %p1400 = scmp.le.s32.totalorder 2, %s10
      // Predicated region
      $region41: #{tpu_custom_call.1} parent=5 // pred_check
        %p1401 = pneg %p1400
      $region42: #{tpu_custom_call.1} parent=5 // pred_check_branch
        %1403 = sbr.rel (%p1401) target = $region44
      $region43: #{tpu_custom_call.1} parent=5 // pred_region
        %s1404 = ssub.s32 %s10, 2
        // Predicated region
        $region45: #{tpu_custom_call.1} parent=43 // pred_check
          %p1405 = pneg %p83
        $region46: #{tpu_custom_call.1} parent=43 // pred_check_branch
          %1407 = sbr.rel (%p1405) target = $region48
        $region47: #{tpu_custom_call.1} parent=43 // pred_region
          %s1408 = sand.u32 %s68, 1
          %s1409 = scalar_lea.sflag [#allocation3], %s1408
          %s1410 = sand.u32 %s68, 1
          %s1411 = smul.addr %s1410, 64
          %s1412 = scalar_lea.vmem [#allocation2], %s1411
          %1413 = dma.done %s1409, 1024
        $region48: #{tpu_custom_call.1} parent=43 // pred_fallthru
          _
      $region44: #{tpu_custom_call.1} parent=5 // pred_fallthru
        _
    $region6: #{tpu_custom_call.1} parent=1 // loop_footer
      %s14 = sadd.s32 1, %s10
    $region7: #{tpu_custom_call.1} parent=1 // loop_footer_branch
      %9 = sbr.rel target = $region3
    $region8: #{tpu_custom_call.1} parent=1 // loop_exit
      _
    %1414 = vsyncpa [#allocation3], 1
    %s1415 = scalar_lea.sflag [#allocation3], 1
    %1416 = vsyncpa %s1415, 1

</llo_original>
